<compile_context>
chip_gen: v7x
topology: tpu7x:2x2x1
jax: 0.10.0
libtpu: 0.0.40
codegen_flags: <defaults>
</compile_context>

<pallas_src>
import jax
import jax.numpy as jnp
import numpy as np
from jax import lax
from jax.experimental import pallas as pl
from jax.experimental.pallas import tpu as pltpu


def _round_up(x, m):
    return ((x + m - 1) // m) * m


def cc_kernel(hidden_ref, mask_ref,
              wi1_ref, bi1_ref, wc1_ref, bc1_ref,
              wi2_ref, bi2_ref, wc2_ref, bc2_ref,
              embed_ref, ins_ref, clu_ref):
    H = hidden_ref.shape[-1]

    # --- masked mean pooling (get_embeddings) ---
    # hidden arrives bf16 (half the HBM bytes on the dominant load); upcast to
    # f32 for the accumulate.  mask is (TB, S, 1): S on sublanes, so the
    # broadcast against (TB, S, H) is along lanes (no XLU relayout).
    hidden = hidden_ref[...].astype(jnp.float32)      # (TB, S, H)
    mask = mask_ref[...]                              # (TB, S, 1) f32
    summed = jnp.sum(hidden * mask, axis=1)           # (TB, H)
    denom = jnp.sum(mask, axis=1)                     # (TB, 1)
    embed = summed / denom                            # exact mean (torch parity)
    embed_ref[...] = embed

    e16 = embed.astype(jnp.bfloat16)

    # --- instance head: Linear -> ReLU -> Linear -> F.normalize(dim=1) ---
    hi = jnp.dot(e16, wi1_ref[...],
                 preferred_element_type=jnp.float32) + bi1_ref[...]
    hi = jnp.maximum(hi, 0.0)
    z = jnp.dot(hi.astype(jnp.bfloat16), wi2_ref[...],
                preferred_element_type=jnp.float32) + bi2_ref[...]
    # torch: z / max(||z||, 1e-12)  ==  z * rsqrt(max(||z||^2, 1e-24))  (EUP)
    inv_norm = lax.rsqrt(jnp.maximum(
        jnp.sum(z * z, axis=1, keepdims=True), 1e-24))
    ins_ref[...] = z * inv_norm

    # --- cluster head: Linear -> ReLU -> Linear -> Softmax(dim=1) ---
    # wc2/bc2 are padded to Cp lanes host-side (zero cols, -1e30 bias) so the
    # store is lane-dense and the softmax over real classes is unaffected.
    hc = jnp.dot(e16, wc1_ref[...],
                 preferred_element_type=jnp.float32) + bc1_ref[...]
    hc = jnp.maximum(hc, 0.0)
    logits = jnp.dot(hc.astype(jnp.bfloat16), wc2_ref[...],
                     preferred_element_type=jnp.float32) + bc2_ref[...]
    mx = jnp.max(logits, axis=1, keepdims=True)
    e = jnp.exp(logits - mx)                                         # EUP
    inv_den = pl.reciprocal(jnp.sum(e, axis=1, keepdims=True),
                            approx=True)                             # EUP
    clu_ref[...] = e * inv_den


def _tpu_generation_defaults():
    kind = ""
    try:
        kind = jax.devices()[0].device_kind.lower()
    except Exception:
        pass
    if "v5" in kind or "v6" in kind:
        # 128 MiB physical VMEM: large tiles amortize per-step overhead and
        # push the mem-bound pooling toward the HBM roofline.
        return dict(vmem_budget=52 << 20, vmem_limit=64 << 20,
                    max_tb=512, min_grid=1)
    # v7x (or unknown): 64 MiB VMEM, 2 TensorCores -> conservative budget and
    # guarantee >= 2 parallel grid steps so the second core has work.
    return dict(vmem_budget=24 << 20, vmem_limit=32 << 20,
                max_tb=256, min_grid=2)


def _choose_block_b(B, S, H, P, Cp, resident_weight_bytes,
                    vmem_budget_bytes, max_tb, min_grid):
    """Batch tile: multiple of 8, sized so the double-buffered activation /
    output tiles plus the resident weights fit the VMEM budget."""
    per_row = (2 * S * H * 2            # double-buffered bf16 hidden tile
               + 2 * S * 4              # double-buffered f32 mask tile
               + 2 * (H + P + Cp) * 4   # double-buffered f32 output tiles
               + 2 * S * H * 4)         # f32 pooling intermediates (working set)
    avail = max(vmem_budget_bytes - resident_weight_bytes, 8 * per_row)
    tb = int(avail // max(per_row, 1))
    tb = max(8, min(int(max_tb), (tb // 8) * 8))
    tb = min(tb, _round_up(B, 8))
    if min_grid > 1 and B >= 8 * min_grid:
        tb = min(tb, _round_up(-(-B // min_grid), 8))   # ceil(B/min_grid)
    return int(tb)


def cc_forward(hidden, mask, params, *, block_b=None, vmem_limit_bytes=None,
               single_buffer_weights=True):
    """Masked pooling + instance head + cluster head in one batch-tiled
    Pallas call.  Returns (embeddings (B,H), L2-normalized instance features
    (B,128), cluster probabilities (B,C))."""
    B, S, H = hidden.shape
    P = params["wi2"].shape[1]          # instance projection dim (128)
    C = params["wc2"].shape[1]          # num_classes
    Pp = _round_up(P, 128)
    Cp = _round_up(C, 128)

    gen = _tpu_generation_defaults()
    if vmem_limit_bytes is None:
        vmem_limit_bytes = gen["vmem_limit"]

    # Host-side prep: bf16 activations + matmul weights (halve DMA bytes,
    # native MXU dtype), f32 biases, lane-padded second-layer weights.
    hidden = hidden.astype(jnp.bfloat16)                 # (B, S, H) bf16
    mask3 = mask.astype(jnp.float32).reshape(B, S, 1)    # S on sublanes

    wi1 = params["wi1"].astype(jnp.bfloat16)
    bi1 = params["bi1"].astype(jnp.float32).reshape(1, H)
    wc1 = params["wc1"].astype(jnp.bfloat16)
    bc1 = params["bc1"].astype(jnp.float32).reshape(1, H)

    wi2 = params["wi2"].astype(jnp.bfloat16)
    bi2 = params["bi2"].astype(jnp.float32).reshape(1, P)
    if Pp > P:
        wi2 = jnp.concatenate([wi2, jnp.zeros((H, Pp - P), jnp.bfloat16)], axis=1)
        bi2 = jnp.concatenate([bi2, jnp.zeros((1, Pp - P), jnp.float32)], axis=1)

    wc2 = params["wc2"].astype(jnp.bfloat16)
    bc2 = params["bc2"].astype(jnp.float32).reshape(1, C)
    if Cp > C:
        # padded logit columns get -1e30 bias -> exp()==0 -> softmax unchanged
        wc2 = jnp.concatenate([wc2, jnp.zeros((H, Cp - C), jnp.bfloat16)], axis=1)
        bc2 = jnp.concatenate([bc2, jnp.full((1, Cp - C), -1e30, jnp.float32)],
                              axis=1)

    weight_bytes = (int(wi1.size + wc1.size + wi2.size + wc2.size) * 2
                    + int(bi1.size + bc1.size + bi2.size + bc2.size) * 4)
    wmult = 1 if single_buffer_weights else 2
    if block_b is None:
        block_b = _choose_block_b(B, S, H, Pp, Cp, wmult * weight_bytes,
                                  gen["vmem_budget"], gen["max_tb"],
                                  gen["min_grid"])
    block_b = max(8, (int(block_b) // 8) * 8)

    grid_b = pl.cdiv(B, block_b)
    Bp = grid_b * block_b
    if Bp != B:
        # pad batch; padded mask rows are all-ones so no 0/0 appears.
        hidden = jnp.concatenate(
            [hidden, jnp.zeros((Bp - B, S, H), hidden.dtype)], axis=0)
        mask3 = jnp.concatenate(
            [mask3, jnp.ones((Bp - B, S, 1), mask3.dtype)], axis=0)

    flops = int(2 * Bp * S * H                 # masked pooling
                + 2 * Bp * H * (2 * H)         # first layers
                + 2 * Bp * H * (Pp + Cp)       # second layers
                + 6 * Bp * (H + Pp + Cp))      # bias/relu/normalize/softmax
    transcendentals = int(Bp * (Cp + 2))       # exp + rsqrt + reciprocal
    bytes_accessed = int(hidden.nbytes + mask3.nbytes + weight_bytes
                         + Bp * (H + Pp + Cp) * 4)

    operands = (hidden, mask3, wi1, bi1, wc1, bc1, wi2, bi2, wc2, bc2)
    out_shape = (
        jax.ShapeDtypeStruct((Bp, H), jnp.float32),    # embeddings
        jax.ShapeDtypeStruct((Bp, Pp), jnp.float32),   # instance feats
        jax.ShapeDtypeStruct((Bp, Cp), jnp.float32),   # cluster probs (padded)
    )

    def run(use_single_buffer):
        if use_single_buffer:
            # Constant-index_map blocks never change between grid steps: the
            # second pipeline buffer is pure VMEM waste (matters on v7x 64MiB).
            def wspec(shape):
                return pl.BlockSpec(shape, lambda i: (0, 0),
                                    pipeline_mode=pl.Buffered(1))
        else:
            def wspec(shape):
                return pl.BlockSpec(shape, lambda i: (0, 0))

        grid_spec = pltpu.PrefetchScalarGridSpec(
            num_scalar_prefetch=0,
            grid=(grid_b,),
            in_specs=[
                pl.BlockSpec((block_b, S, H), lambda i: (i, 0, 0)),   # hidden
                pl.BlockSpec((block_b, S, 1), lambda i: (i, 0, 0)),   # mask
                wspec((H, H)), wspec((1, H)),                         # wi1, bi1
                wspec((H, H)), wspec((1, H)),                         # wc1, bc1
                wspec((H, Pp)), wspec((1, Pp)),                       # wi2, bi2
                wspec((H, Cp)), wspec((1, Cp)),                       # wc2, bc2
            ],
            out_specs=(
                pl.BlockSpec((block_b, H), lambda i: (i, 0)),
                pl.BlockSpec((block_b, Pp), lambda i: (i, 0)),
                pl.BlockSpec((block_b, Cp), lambda i: (i, 0)),
            ),
        )
        out = pl.pallas_call(
            cc_kernel,
            out_shape=out_shape,
            grid_spec=grid_spec,
            compiler_params=pltpu.CompilerParams(
                dimension_semantics=("parallel",),
                vmem_limit_bytes=int(vmem_limit_bytes)),
            cost_estimate=pl.CostEstimate(
                flops=flops,
                transcendentals=transcendentals,
                bytes_accessed=bytes_accessed),
        )(*operands)
        return jax.block_until_ready(out)

    try:
        embed, ins_feat, clu_prob = run(single_buffer_weights)
    except Exception:
        if not single_buffer_weights:
            raise
        # graceful fallback if this jax build rejects single-buffered blocks
        embed, ins_feat, clu_prob = run(False)

    return embed[:B], ins_feat[:B, :P], clu_prob[:B, :C]


def make_params(key, hidden_size, num_classes, proj_dim=128):
    ks = jax.random.split(key, 8)
    scale = 0.05
    return {
        "wi1": scale * jax.random.normal(ks[0], (hidden_size, hidden_size), jnp.float32),
        "bi1": scale * jax.random.normal(ks[1], (1, hidden_size), jnp.float32),
        "wi2": scale * jax.random.normal(ks[2], (hidden_size, proj_dim), jnp.float32),
        "bi2": scale * jax.random.normal(ks[3], (1, proj_dim), jnp.float32),
        "wc1": scale * jax.random.normal(ks[4], (hidden_size, hidden_size), jnp.float32),
        "bc1": scale * jax.random.normal(ks[5], (1, hidden_size), jnp.float32),
        "wc2": scale * jax.random.normal(ks[6], (hidden_size, num_classes), jnp.float32),
        "bc2": scale * jax.random.normal(ks[7], (1, num_classes), jnp.float32),
    }


def reference_forward(hidden_bf16, mask, p):
    """Plain-JAX reference using the same precision choices as the kernel
    (bf16 hidden + matmul operands, f32 pooling / normalize / softmax)."""
    hidden = hidden_bf16.astype(jnp.float32)
    m = mask.astype(jnp.float32)[:, :, None]
    embed = jnp.sum(hidden * m, axis=1) / jnp.sum(m, axis=1)
    e16 = embed.astype(jnp.bfloat16)

    hi = jnp.maximum(jnp.dot(e16, p["wi1"].astype(jnp.bfloat16),
                             preferred_element_type=jnp.float32) + p["bi1"], 0.0)
    z = jnp.dot(hi.astype(jnp.bfloat16), p["wi2"].astype(jnp.bfloat16),
                preferred_element_type=jnp.float32) + p["bi2"]
    ins = z / jnp.maximum(jnp.linalg.norm(z, axis=1, keepdims=True), 1e-12)

    hc = jnp.maximum(jnp.dot(e16, p["wc1"].astype(jnp.bfloat16),
                             preferred_element_type=jnp.float32) + p["bc1"], 0.0)
    lg = jnp.dot(hc.astype(jnp.bfloat16), p["wc2"].astype(jnp.bfloat16),
                 preferred_element_type=jnp.float32) + p["bc2"]
    clu = jax.nn.softmax(lg, axis=1)
    return embed, ins, clu


if __name__ == "__main__":
    B, S, H, C, VOCAB = 8, 8, 32, 16, 100

    key = jax.random.PRNGKey(0)
    k_ids, k_emb, k_par, k_len = jax.random.split(key, 4)

    # TODO(synk): the transformer backbone is an external dependency; modeled
    # here as a deterministic embedding lookup producing bf16 hidden states.
    input_ids = jax.random.randint(k_ids, (B, S), 0, VOCAB)
    emb_table = 0.1 * jax.random.normal(k_emb, (VOCAB, H), jnp.float32)
    hidden_states = emb_table[input_ids].astype(jnp.bfloat16)         # (B, S, H)

    # attention mask with variable valid lengths (at least 1 valid token)
    lengths = jax.random.randint(k_len, (B,), 1, S + 1)
    attention_mask = (jnp.arange(S)[None, :] < lengths[:, None]).astype(jnp.float32)

    params = make_params(k_par, H, C)

    # As in the PyTorch forward, embed0 and embed1 come from two identical
    # (deterministic) backbone passes, so both head branches share the result.
    embed0, ins_feat1, clu_prob1 = cc_forward(hidden_states, attention_mask, params)
    jax.block_until_ready((embed0, ins_feat1, clu_prob1))

    # correctness check vs. plain-JAX reference
    r_embed, r_ins, r_clu = reference_forward(hidden_states, attention_mask, params)
    assert np.allclose(np.asarray(embed0), np.asarray(r_embed), atol=1e-4), "embed mismatch"
    assert np.allclose(np.asarray(ins_feat1), np.asarray(r_ins), atol=2e-3), "instance feat mismatch"
    assert np.allclose(np.asarray(clu_prob1), np.asarray(r_clu), atol=2e-3), "cluster prob mismatch"

    print("KERNEL_OK")
</pallas_src>

<mosaic_0001>
module attributes {stable_mosaic.version = 11 : i64} {
  func.func @cc_kernel(%arg0: i32, %arg1: memref<8x8x32xbf16, #tpu.memory_space<vmem>>, %arg2: memref<8x8x1xf32, #tpu.memory_space<vmem>>, %arg3: memref<32x32xbf16, #tpu.memory_space<vmem>>, %arg4: memref<1x32xf32, #tpu.memory_space<vmem>>, %arg5: memref<32x32xbf16, #tpu.memory_space<vmem>>, %arg6: memref<1x32xf32, #tpu.memory_space<vmem>>, %arg7: memref<32x128xbf16, #tpu.memory_space<vmem>>, %arg8: memref<1x128xf32, #tpu.memory_space<vmem>>, %arg9: memref<32x128xbf16, #tpu.memory_space<vmem>>, %arg10: memref<1x128xf32, #tpu.memory_space<vmem>>, %arg11: memref<8x32xf32, #tpu.memory_space<vmem>>, %arg12: memref<8x128xf32, #tpu.memory_space<vmem>>, %arg13: memref<8x128xf32, #tpu.memory_space<vmem>>) attributes {dimension_semantics = [#tpu.dimension_semantics<parallel>], iteration_bounds = array<i64: 1>, scalar_prefetch = 0 : i64, scratch_operands = 0 : i64, tpu.core_type = #tpu.core_type<tc>, window_params = [{transform_indices = @transform_0, window_bounds = array<i64: 8, 8, 32>}, {transform_indices = @transform_1, window_bounds = array<i64: 8, 8, 1>}, {pipeline_mode = #tpu.pipeline_mode<synchronous>, transform_indices = @transform_2, window_bounds = array<i64: 32, 32>}, {pipeline_mode = #tpu.pipeline_mode<synchronous>, transform_indices = @transform_3, window_bounds = array<i64: 1, 32>}, {pipeline_mode = #tpu.pipeline_mode<synchronous>, transform_indices = @transform_4, window_bounds = array<i64: 32, 32>}, {pipeline_mode = #tpu.pipeline_mode<synchronous>, transform_indices = @transform_5, window_bounds = array<i64: 1, 32>}, {pipeline_mode = #tpu.pipeline_mode<synchronous>, transform_indices = @transform_6, window_bounds = array<i64: 32, 128>}, {pipeline_mode = #tpu.pipeline_mode<synchronous>, transform_indices = @transform_7, window_bounds = array<i64: 1, 128>}, {pipeline_mode = #tpu.pipeline_mode<synchronous>, transform_indices = @transform_8, window_bounds = array<i64: 32, 128>}, {pipeline_mode = #tpu.pipeline_mode<synchronous>, transform_indices = @transform_9, window_bounds = array<i64: 1, 128>}, {transform_indices = @transform_10, window_bounds = array<i64: 8, 32>}, {transform_indices = @transform_11, window_bounds = array<i64: 8, 128>}, {transform_indices = @transform_12, window_bounds = array<i64: 8, 128>}]} {
    %c0 = arith.constant 0 : index
    %c0_0 = arith.constant 0 : index
    %c0_1 = arith.constant 0 : index
    %0 = vector.load %arg1[%c0, %c0_0, %c0_1] : memref<8x8x32xbf16, #tpu.memory_space<vmem>>, vector<8x8x32xbf16>
    %1 = arith.extf %0 : vector<8x8x32xbf16> to vector<8x8x32xf32>
    %c0_2 = arith.constant 0 : index
    %c0_3 = arith.constant 0 : index
    %c0_4 = arith.constant 0 : index
    %2 = vector.load %arg2[%c0_2, %c0_3, %c0_4] : memref<8x8x1xf32, #tpu.memory_space<vmem>>, vector<8x8x1xf32>
    %3 = vector.broadcast %2 : vector<8x8x1xf32> to vector<8x8x32xf32>
    %4 = arith.mulf %1, %3 : vector<8x8x32xf32>
    %cst = arith.constant dense<0.000000e+00> : vector<8x32xf32>
    %5 = vector.multi_reduction <add>, %4, %cst [1] : vector<8x8x32xf32> to vector<8x32xf32>
    %cst_5 = arith.constant dense<0.000000e+00> : vector<8x1xf32>
    %6 = vector.multi_reduction <add>, %2, %cst_5 [1] : vector<8x8x1xf32> to vector<8x1xf32>
    %7 = vector.broadcast %6 : vector<8x1xf32> to vector<8x32xf32>
    %8 = arith.divf %5, %7 : vector<8x32xf32>
    %c0_6 = arith.constant 0 : index
    %c0_7 = arith.constant 0 : index
    %9 = vector.load %arg11[%c0_6, %c0_7] : memref<8x32xf32, #tpu.memory_space<vmem>>, vector<8x32xf32>
    tpu.vector_store %arg11[%c0_6, %c0_7], %8 {strides = array<i32>} : memref<8x32xf32, #tpu.memory_space<vmem>>, vector<8x32xf32>,
    %10 = arith.truncf %8 : vector<8x32xf32> to vector<8x32xbf16>
    %c0_8 = arith.constant 0 : index
    %c0_9 = arith.constant 0 : index
    %11 = vector.load %arg3[%c0_8, %c0_9] : memref<32x32xbf16, #tpu.memory_space<vmem>>, vector<32x32xbf16>
    %cst_10 = arith.constant dense<0.000000e+00> : vector<8x32xf32>
    %12 = tpu.matmul %10, %11, %cst_10 {dimension_numbers = #tpu.dot_dimension_numbers<[1], [0], [0], [1], [0, 0, 1, 1], [], []>} : vector<8x32xbf16>, vector<32x32xbf16>, vector<8x32xf32> -> vector<8x32xf32>
    %c0_11 = arith.constant 0 : index
    %c0_12 = arith.constant 0 : index
    %13 = vector.load %arg4[%c0_11, %c0_12] : memref<1x32xf32, #tpu.memory_space<vmem>>, vector<1x32xf32>
    %14 = vector.broadcast %13 : vector<1x32xf32> to vector<8x32xf32>
    %15 = arith.addf %12, %14 : vector<8x32xf32>
    %cst_13 = arith.constant 0.000000e+00 : f32
    %16 = vector.broadcast %cst_13 : f32 to vector<8x32xf32>
    %17 = arith.maximumf %15, %16 : vector<8x32xf32>
    %18 = arith.truncf %17 : vector<8x32xf32> to vector<8x32xbf16>
    %c0_14 = arith.constant 0 : index
    %c0_15 = arith.constant 0 : index
    %19 = vector.load %arg7[%c0_14, %c0_15] : memref<32x128xbf16, #tpu.memory_space<vmem>>, vector<32x128xbf16>
    %cst_16 = arith.constant dense<0.000000e+00> : vector<8x128xf32>
    %20 = tpu.matmul %18, %19, %cst_16 {dimension_numbers = #tpu.dot_dimension_numbers<[1], [0], [0], [1], [0, 0, 1, 1], [], []>} : vector<8x32xbf16>, vector<32x128xbf16>, vector<8x128xf32> -> vector<8x128xf32>
    %c0_17 = arith.constant 0 : index
    %c0_18 = arith.constant 0 : index
    %21 = vector.load %arg8[%c0_17, %c0_18] : memref<1x128xf32, #tpu.memory_space<vmem>>, vector<1x128xf32>
    %22 = vector.broadcast %21 : vector<1x128xf32> to vector<8x128xf32>
    %23 = arith.addf %20, %22 : vector<8x128xf32>
    %24 = arith.mulf %23, %23 : vector<8x128xf32>
    %cst_19 = arith.constant dense<0.000000e+00> : vector<8xf32>
    %25 = vector.multi_reduction <add>, %24, %cst_19 [1] : vector<8x128xf32> to vector<8xf32>
    %26 = vector.shape_cast %25 : vector<8xf32> to vector<8x1xf32>
    %cst_20 = arith.constant 1.000000e-24 : f32
    %27 = vector.broadcast %cst_20 : f32 to vector<8x1xf32>
    %28 = arith.maximumf %26, %27 : vector<8x1xf32>
    %29 = math.rsqrt %28 : vector<8x1xf32>
    %30 = vector.broadcast %29 : vector<8x1xf32> to vector<8x128xf32>
    %31 = arith.mulf %23, %30 : vector<8x128xf32>
    %c0_21 = arith.constant 0 : index
    %c0_22 = arith.constant 0 : index
    %32 = vector.load %arg12[%c0_21, %c0_22] : memref<8x128xf32, #tpu.memory_space<vmem>>, vector<8x128xf32>
    tpu.vector_store %arg12[%c0_21, %c0_22], %31 {strides = array<i32>} : memref<8x128xf32, #tpu.memory_space<vmem>>, vector<8x128xf32>,
    %c0_23 = arith.constant 0 : index
    %c0_24 = arith.constant 0 : index
    %33 = vector.load %arg5[%c0_23, %c0_24] : memref<32x32xbf16, #tpu.memory_space<vmem>>, vector<32x32xbf16>
    %cst_25 = arith.constant dense<0.000000e+00> : vector<8x32xf32>
    %34 = tpu.matmul %10, %33, %cst_25 {dimension_numbers = #tpu.dot_dimension_numbers<[1], [0], [0], [1], [0, 0, 1, 1], [], []>} : vector<8x32xbf16>, vector<32x32xbf16>, vector<8x32xf32> -> vector<8x32xf32>
    %c0_26 = arith.constant 0 : index
    %c0_27 = arith.constant 0 : index
    %35 = vector.load %arg6[%c0_26, %c0_27] : memref<1x32xf32, #tpu.memory_space<vmem>>, vector<1x32xf32>
    %36 = vector.broadcast %35 : vector<1x32xf32> to vector<8x32xf32>
    %37 = arith.addf %34, %36 : vector<8x32xf32>
    %cst_28 = arith.constant 0.000000e+00 : f32
    %38 = vector.broadcast %cst_28 : f32 to vector<8x32xf32>
    %39 = arith.maximumf %37, %38 : vector<8x32xf32>
    %40 = arith.truncf %39 : vector<8x32xf32> to vector<8x32xbf16>
    %c0_29 = arith.constant 0 : index
    %c0_30 = arith.constant 0 : index
    %41 = vector.load %arg9[%c0_29, %c0_30] : memref<32x128xbf16, #tpu.memory_space<vmem>>, vector<32x128xbf16>
    %cst_31 = arith.constant dense<0.000000e+00> : vector<8x128xf32>
    %42 = tpu.matmul %40, %41, %cst_31 {dimension_numbers = #tpu.dot_dimension_numbers<[1], [0], [0], [1], [0, 0, 1, 1], [], []>} : vector<8x32xbf16>, vector<32x128xbf16>, vector<8x128xf32> -> vector<8x128xf32>
    %c0_32 = arith.constant 0 : index
    %c0_33 = arith.constant 0 : index
    %43 = vector.load %arg10[%c0_32, %c0_33] : memref<1x128xf32, #tpu.memory_space<vmem>>, vector<1x128xf32>
    %44 = vector.broadcast %43 : vector<1x128xf32> to vector<8x128xf32>
    %45 = arith.addf %42, %44 : vector<8x128xf32>
    %cst_34 = arith.constant dense<0xFF800000> : vector<8xf32>
    %46 = vector.multi_reduction <maximumf>, %45, %cst_34 [1] : vector<8x128xf32> to vector<8xf32>
    %47 = vector.shape_cast %46 : vector<8xf32> to vector<8x1xf32>
    %48 = vector.broadcast %47 : vector<8x1xf32> to vector<8x128xf32>
    %49 = arith.subf %45, %48 : vector<8x128xf32>
    %50 = math.exp %49 : vector<8x128xf32>
    %cst_35 = arith.constant dense<0.000000e+00> : vector<8xf32>
    %51 = vector.multi_reduction <add>, %50, %cst_35 [1] : vector<8x128xf32> to vector<8xf32>
    %52 = vector.shape_cast %51 : vector<8xf32> to vector<8x1xf32>
    %53 = tpu.reciprocal %52 {approx = true} : vector<8x1xf32> -> vector<8x1xf32>
    %54 = vector.broadcast %53 : vector<8x1xf32> to vector<8x128xf32>
    %55 = arith.mulf %50, %54 : vector<8x128xf32>
    %c0_36 = arith.constant 0 : index
    %c0_37 = arith.constant 0 : index
    %56 = vector.load %arg13[%c0_36, %c0_37] : memref<8x128xf32, #tpu.memory_space<vmem>>, vector<8x128xf32>
    tpu.vector_store %arg13[%c0_36, %c0_37], %55 {strides = array<i32>} : memref<8x128xf32, #tpu.memory_space<vmem>>, vector<8x128xf32>,
    return
  }
  func.func @transform_0(%arg0: i32) -> (i32, i32, i32) {
    %c0_i32 = arith.constant 0 : i32
    %c0_i32_0 = arith.constant 0 : i32
    %c0_i32_1 = arith.constant 0 : i32
    return %arg0, %c0_i32, %c0_i32_0 : i32, i32, i32
  }
  func.func @transform_1(%arg0: i32) -> (i32, i32, i32) {
    %c0_i32 = arith.constant 0 : i32
    %c0_i32_0 = arith.constant 0 : i32
    %c0_i32_1 = arith.constant 0 : i32
    return %arg0, %c0_i32, %c0_i32_0 : i32, i32, i32
  }
  func.func @transform_2(%arg0: i32) -> (i32, i32) {
    %c0_i32 = arith.constant 0 : i32
    %c0_i32_0 = arith.constant 0 : i32
    %c0_i32_1 = arith.constant 0 : i32
    return %c0_i32, %c0_i32_0 : i32, i32
  }
  func.func @transform_3(%arg0: i32) -> (i32, i32) {
    %c0_i32 = arith.constant 0 : i32
    %c0_i32_0 = arith.constant 0 : i32
    %c0_i32_1 = arith.constant 0 : i32
    return %c0_i32, %c0_i32_0 : i32, i32
  }
  func.func @transform_4(%arg0: i32) -> (i32, i32) {
    %c0_i32 = arith.constant 0 : i32
    %c0_i32_0 = arith.constant 0 : i32
    %c0_i32_1 = arith.constant 0 : i32
    return %c0_i32, %c0_i32_0 : i32, i32
  }
  func.func @transform_5(%arg0: i32) -> (i32, i32) {
    %c0_i32 = arith.constant 0 : i32
    %c0_i32_0 = arith.constant 0 : i32
    %c0_i32_1 = arith.constant 0 : i32
    return %c0_i32, %c0_i32_0 : i32, i32
  }
  func.func @transform_6(%arg0: i32) -> (i32, i32) {
    %c0_i32 = arith.constant 0 : i32
    %c0_i32_0 = arith.constant 0 : i32
    %c0_i32_1 = arith.constant 0 : i32
    return %c0_i32, %c0_i32_0 : i32, i32
  }
  func.func @transform_7(%arg0: i32) -> (i32, i32) {
    %c0_i32 = arith.constant 0 : i32
    %c0_i32_0 = arith.constant 0 : i32
    %c0_i32_1 = arith.constant 0 : i32
    return %c0_i32, %c0_i32_0 : i32, i32
  }
  func.func @transform_8(%arg0: i32) -> (i32, i32) {
    %c0_i32 = arith.constant 0 : i32
    %c0_i32_0 = arith.constant 0 : i32
    %c0_i32_1 = arith.constant 0 : i32
    return %c0_i32, %c0_i32_0 : i32, i32
  }
  func.func @transform_9(%arg0: i32) -> (i32, i32) {
    %c0_i32 = arith.constant 0 : i32
    %c0_i32_0 = arith.constant 0 : i32
    %c0_i32_1 = arith.constant 0 : i32
    return %c0_i32, %c0_i32_0 : i32, i32
  }
  func.func @transform_10(%arg0: i32) -> (i32, i32) {
    %c0_i32 = arith.constant 0 : i32
    %c0_i32_0 = arith.constant 0 : i32
    return %arg0, %c0_i32 : i32, i32
  }
  func.func @transform_11(%arg0: i32) -> (i32, i32) {
    %c0_i32 = arith.constant 0 : i32
    %c0_i32_0 = arith.constant 0 : i32
    return %arg0, %c0_i32 : i32, i32
  }
  func.func @transform_12(%arg0: i32) -> (i32, i32) {
    %c0_i32 = arith.constant 0 : i32
    %c0_i32_0 = arith.constant 0 : i32
    return %arg0, %c0_i32 : i32, i32
  }
}

module attributes {stable_mosaic.version = 11 : i64} {
  func.func @cc_kernel(%arg0: i32, %arg1: memref<8x8x32xbf16, #tpu.memory_space<vmem>>, %arg2: memref<8x8x1xf32, #tpu.memory_space<vmem>>, %arg3: memref<32x32xbf16, #tpu.memory_space<vmem>>, %arg4: memref<1x32xf32, #tpu.memory_space<vmem>>, %arg5: memref<32x32xbf16, #tpu.memory_space<vmem>>, %arg6: memref<1x32xf32, #tpu.memory_space<vmem>>, %arg7: memref<32x128xbf16, #tpu.memory_space<vmem>>, %arg8: memref<1x128xf32, #tpu.memory_space<vmem>>, %arg9: memref<32x128xbf16, #tpu.memory_space<vmem>>, %arg10: memref<1x128xf32, #tpu.memory_space<vmem>>, %arg11: memref<8x32xf32, #tpu.memory_space<vmem>>, %arg12: memref<8x128xf32, #tpu.memory_space<vmem>>, %arg13: memref<8x128xf32, #tpu.memory_space<vmem>>) attributes {dimension_semantics = [#tpu.dimension_semantics<parallel>], iteration_bounds = array<i64: 1>, scalar_prefetch = 0 : i64, scratch_operands = 0 : i64, tpu.core_type = #tpu.core_type<tc>, window_params = [{transform_indices = @transform_0, window_bounds = array<i64: 8, 8, 32>}, {transform_indices = @transform_1, window_bounds = array<i64: 8, 8, 1>}, {pipeline_mode = #tpu.pipeline_mode<synchronous>, transform_indices = @transform_2, window_bounds = array<i64: 32, 32>}, {pipeline_mode = #tpu.pipeline_mode<synchronous>, transform_indices = @transform_3, window_bounds = array<i64: 1, 32>}, {pipeline_mode = #tpu.pipeline_mode<synchronous>, transform_indices = @transform_4, window_bounds = array<i64: 32, 32>}, {pipeline_mode = #tpu.pipeline_mode<synchronous>, transform_indices = @transform_5, window_bounds = array<i64: 1, 32>}, {pipeline_mode = #tpu.pipeline_mode<synchronous>, transform_indices = @transform_6, window_bounds = array<i64: 32, 128>}, {pipeline_mode = #tpu.pipeline_mode<synchronous>, transform_indices = @transform_7, window_bounds = array<i64: 1, 128>}, {pipeline_mode = #tpu.pipeline_mode<synchronous>, transform_indices = @transform_8, window_bounds = array<i64: 32, 128>}, {pipeline_mode = #tpu.pipeline_mode<synchronous>, transform_indices = @transform_9, window_bounds = array<i64: 1, 128>}, {transform_indices = @transform_10, window_bounds = array<i64: 8, 32>}, {transform_indices = @transform_11, window_bounds = array<i64: 8, 128>}, {transform_indices = @transform_12, window_bounds = array<i64: 8, 128>}]} {
    %c0 = arith.constant 0 : index
    %c0_0 = arith.constant 0 : index
    %c0_1 = arith.constant 0 : index
    %0 = vector.load %arg1[%c0, %c0_0, %c0_1] : memref<8x8x32xbf16, #tpu.memory_space<vmem>>, vector<8x8x32xbf16>
    %1 = arith.extf %0 : vector<8x8x32xbf16> to vector<8x8x32xf32>
    %c0_2 = arith.constant 0 : index
    %c0_3 = arith.constant 0 : index
    %c0_4 = arith.constant 0 : index
    %2 = vector.load %arg2[%c0_2, %c0_3, %c0_4] : memref<8x8x1xf32, #tpu.memory_space<vmem>>, vector<8x8x1xf32>
    %3 = vector.broadcast %2 : vector<8x8x1xf32> to vector<8x8x32xf32>
    %4 = arith.mulf %1, %3 : vector<8x8x32xf32>
    %cst = arith.constant dense<0.000000e+00> : vector<8x32xf32>
    %5 = vector.multi_reduction <add>, %4, %cst [1] : vector<8x8x32xf32> to vector<8x32xf32>
    %cst_5 = arith.constant dense<0.000000e+00> : vector<8x1xf32>
    %6 = vector.multi_reduction <add>, %2, %cst_5 [1] : vector<8x8x1xf32> to vector<8x1xf32>
    %7 = vector.broadcast %6 : vector<8x1xf32> to vector<8x32xf32>
    %8 = arith.divf %5, %7 : vector<8x32xf32>
    %c0_6 = arith.constant 0 : index
    %c0_7 = arith.constant 0 : index
    %9 = vector.load %arg11[%c0_6, %c0_7] : memref<8x32xf32, #tpu.memory_space<vmem>>, vector<8x32xf32>
    tpu.vector_store %arg11[%c0_6, %c0_7], %8 {strides = array<i32>} : memref<8x32xf32, #tpu.memory_space<vmem>>, vector<8x32xf32>,
    %10 = arith.truncf %8 : vector<8x32xf32> to vector<8x32xbf16>
    %c0_8 = arith.constant 0 : index
    %c0_9 = arith.constant 0 : index
    %11 = vector.load %arg3[%c0_8, %c0_9] : memref<32x32xbf16, #tpu.memory_space<vmem>>, vector<32x32xbf16>
    %cst_10 = arith.constant dense<0.000000e+00> : vector<8x32xf32>
    %12 = tpu.matmul %10, %11, %cst_10 {dimension_numbers = #tpu.dot_dimension_numbers<[1], [0], [0], [1], [0, 0, 1, 1], [], []>} : vector<8x32xbf16>, vector<32x32xbf16>, vector<8x32xf32> -> vector<8x32xf32>
    %c0_11 = arith.constant 0 : index
    %c0_12 = arith.constant 0 : index
    %13 = vector.load %arg4[%c0_11, %c0_12] : memref<1x32xf32, #tpu.memory_space<vmem>>, vector<1x32xf32>
    %14 = vector.broadcast %13 : vector<1x32xf32> to vector<8x32xf32>
    %15 = arith.addf %12, %14 : vector<8x32xf32>
    %cst_13 = arith.constant 0.000000e+00 : f32
    %16 = vector.broadcast %cst_13 : f32 to vector<8x32xf32>
    %17 = arith.maximumf %15, %16 : vector<8x32xf32>
    %18 = arith.truncf %17 : vector<8x32xf32> to vector<8x32xbf16>
    %c0_14 = arith.constant 0 : index
    %c0_15 = arith.constant 0 : index
    %19 = vector.load %arg7[%c0_14, %c0_15] : memref<32x128xbf16, #tpu.memory_space<vmem>>, vector<32x128xbf16>
    %cst_16 = arith.constant dense<0.000000e+00> : vector<8x128xf32>
    %20 = tpu.matmul %18, %19, %cst_16 {dimension_numbers = #tpu.dot_dimension_numbers<[1], [0], [0], [1], [0, 0, 1, 1], [], []>} : vector<8x32xbf16>, vector<32x128xbf16>, vector<8x128xf32> -> vector<8x128xf32>
    %c0_17 = arith.constant 0 : index
    %c0_18 = arith.constant 0 : index
    %21 = vector.load %arg8[%c0_17, %c0_18] : memref<1x128xf32, #tpu.memory_space<vmem>>, vector<1x128xf32>
    %22 = vector.broadcast %21 : vector<1x128xf32> to vector<8x128xf32>
    %23 = arith.addf %20, %22 : vector<8x128xf32>
    %24 = arith.mulf %23, %23 : vector<8x128xf32>
    %cst_19 = arith.constant dense<0.000000e+00> : vector<8xf32>
    %25 = vector.multi_reduction <add>, %24, %cst_19 [1] : vector<8x128xf32> to vector<8xf32>
    %26 = vector.shape_cast %25 : vector<8xf32> to vector<8x1xf32>
    %cst_20 = arith.constant 1.000000e-24 : f32
    %27 = vector.broadcast %cst_20 : f32 to vector<8x1xf32>
    %28 = arith.maximumf %26, %27 : vector<8x1xf32>
    %29 = math.rsqrt %28 : vector<8x1xf32>
    %30 = vector.broadcast %29 : vector<8x1xf32> to vector<8x128xf32>
    %31 = arith.mulf %23, %30 : vector<8x128xf32>
    %c0_21 = arith.constant 0 : index
    %c0_22 = arith.constant 0 : index
    %32 = vector.load %arg12[%c0_21, %c0_22] : memref<8x128xf32, #tpu.memory_space<vmem>>, vector<8x128xf32>
    tpu.vector_store %arg12[%c0_21, %c0_22], %31 {strides = array<i32>} : memref<8x128xf32, #tpu.memory_space<vmem>>, vector<8x128xf32>,
    %c0_23 = arith.constant 0 : index
    %c0_24 = arith.constant 0 : index
    %33 = vector.load %arg5[%c0_23, %c0_24] : memref<32x32xbf16, #tpu.memory_space<vmem>>, vector<32x32xbf16>
    %cst_25 = arith.constant dense<0.000000e+00> : vector<8x32xf32>
    %34 = tpu.matmul %10, %33, %cst_25 {dimension_numbers = #tpu.dot_dimension_numbers<[1], [0], [0], [1], [0, 0, 1, 1], [], []>} : vector<8x32xbf16>, vector<32x32xbf16>, vector<8x32xf32> -> vector<8x32xf32>
    %c0_26 = arith.constant 0 : index
    %c0_27 = arith.constant 0 : index
    %35 = vector.load %arg6[%c0_26, %c0_27] : memref<1x32xf32, #tpu.memory_space<vmem>>, vector<1x32xf32>
    %36 = vector.broadcast %35 : vector<1x32xf32> to vector<8x32xf32>
    %37 = arith.addf %34, %36 : vector<8x32xf32>
    %cst_28 = arith.constant 0.000000e+00 : f32
    %38 = vector.broadcast %cst_28 : f32 to vector<8x32xf32>
    %39 = arith.maximumf %37, %38 : vector<8x32xf32>
    %40 = arith.truncf %39 : vector<8x32xf32> to vector<8x32xbf16>
    %c0_29 = arith.constant 0 : index
    %c0_30 = arith.constant 0 : index
    %41 = vector.load %arg9[%c0_29, %c0_30] : memref<32x128xbf16, #tpu.memory_space<vmem>>, vector<32x128xbf16>
    %cst_31 = arith.constant dense<0.000000e+00> : vector<8x128xf32>
    %42 = tpu.matmul %40, %41, %cst_31 {dimension_numbers = #tpu.dot_dimension_numbers<[1], [0], [0], [1], [0, 0, 1, 1], [], []>} : vector<8x32xbf16>, vector<32x128xbf16>, vector<8x128xf32> -> vector<8x128xf32>
    %c0_32 = arith.constant 0 : index
    %c0_33 = arith.constant 0 : index
    %43 = vector.load %arg10[%c0_32, %c0_33] : memref<1x128xf32, #tpu.memory_space<vmem>>, vector<1x128xf32>
    %44 = vector.broadcast %43 : vector<1x128xf32> to vector<8x128xf32>
    %45 = arith.addf %42, %44 : vector<8x128xf32>
    %cst_34 = arith.constant dense<0xFF800000> : vector<8xf32>
    %46 = vector.multi_reduction <maximumf>, %45, %cst_34 [1] : vector<8x128xf32> to vector<8xf32>
    %47 = vector.shape_cast %46 : vector<8xf32> to vector<8x1xf32>
    %48 = vector.broadcast %47 : vector<8x1xf32> to vector<8x128xf32>
    %49 = arith.subf %45, %48 : vector<8x128xf32>
    %50 = math.exp %49 : vector<8x128xf32>
    %cst_35 = arith.constant dense<0.000000e+00> : vector<8xf32>
    %51 = vector.multi_reduction <add>, %50, %cst_35 [1] : vector<8x128xf32> to vector<8xf32>
    %52 = vector.shape_cast %51 : vector<8xf32> to vector<8x1xf32>
    %53 = tpu.reciprocal %52 {approx = true} : vector<8x1xf32> -> vector<8x1xf32>
    %54 = vector.broadcast %53 : vector<8x1xf32> to vector<8x128xf32>
    %55 = arith.mulf %50, %54 : vector<8x128xf32>
    %c0_36 = arith.constant 0 : index
    %c0_37 = arith.constant 0 : index
    %56 = vector.load %arg13[%c0_36, %c0_37] : memref<8x128xf32, #tpu.memory_space<vmem>>, vector<8x128xf32>
    tpu.vector_store %arg13[%c0_36, %c0_37], %55 {strides = array<i32>} : memref<8x128xf32, #tpu.memory_space<vmem>>, vector<8x128xf32>,
    return
  }
  func.func @transform_0(%arg0: i32) -> (i32, i32, i32) {
    %c0_i32 = arith.constant 0 : i32
    %c0_i32_0 = arith.constant 0 : i32
    %c0_i32_1 = arith.constant 0 : i32
    return %arg0, %c0_i32, %c0_i32_0 : i32, i32, i32
  }
  func.func @transform_1(%arg0: i32) -> (i32, i32, i32) {
    %c0_i32 = arith.constant 0 : i32
    %c0_i32_0 = arith.constant 0 : i32
    %c0_i32_1 = arith.constant 0 : i32
    return %arg0, %c0_i32, %c0_i32_0 : i32, i32, i32
  }
  func.func @transform_2(%arg0: i32) -> (i32, i32) {
    %c0_i32 = arith.constant 0 : i32
    %c0_i32_0 = arith.constant 0 : i32
    %c0_i32_1 = arith.constant 0 : i32
    return %c0_i32, %c0_i32_0 : i32, i32
  }
  func.func @transform_3(%arg0: i32) -> (i32, i32) {
    %c0_i32 = arith.constant 0 : i32
    %c0_i32_0 = arith.constant 0 : i32
    %c0_i32_1 = arith.constant 0 : i32
    return %c0_i32, %c0_i32_0 : i32, i32
  }
  func.func @transform_4(%arg0: i32) -> (i32, i32) {
    %c0_i32 = arith.constant 0 : i32
    %c0_i32_0 = arith.constant 0 : i32
    %c0_i32_1 = arith.constant 0 : i32
    return %c0_i32, %c0_i32_0 : i32, i32
  }
  func.func @transform_5(%arg0: i32) -> (i32, i32) {
    %c0_i32 = arith.constant 0 : i32
    %c0_i32_0 = arith.constant 0 : i32
    %c0_i32_1 = arith.constant 0 : i32
    return %c0_i32, %c0_i32_0 : i32, i32
  }
  func.func @transform_6(%arg0: i32) -> (i32, i32) {
    %c0_i32 = arith.constant 0 : i32
    %c0_i32_0 = arith.constant 0 : i32
    %c0_i32_1 = arith.constant 0 : i32
    return %c0_i32, %c0_i32_0 : i32, i32
  }
  func.func @transform_7(%arg0: i32) -> (i32, i32) {
    %c0_i32 = arith.constant 0 : i32
    %c0_i32_0 = arith.constant 0 : i32
    %c0_i32_1 = arith.constant 0 : i32
    return %c0_i32, %c0_i32_0 : i32, i32
  }
  func.func @transform_8(%arg0: i32) -> (i32, i32) {
    %c0_i32 = arith.constant 0 : i32
    %c0_i32_0 = arith.constant 0 : i32
    %c0_i32_1 = arith.constant 0 : i32
    return %c0_i32, %c0_i32_0 : i32, i32
  }
  func.func @transform_9(%arg0: i32) -> (i32, i32) {
    %c0_i32 = arith.constant 0 : i32
    %c0_i32_0 = arith.constant 0 : i32
    %c0_i32_1 = arith.constant 0 : i32
    return %c0_i32, %c0_i32_0 : i32, i32
  }
  func.func @transform_10(%arg0: i32) -> (i32, i32) {
    %c0_i32 = arith.constant 0 : i32
    %c0_i32_0 = arith.constant 0 : i32
    return %arg0, %c0_i32 : i32, i32
  }
  func.func @transform_11(%arg0: i32) -> (i32, i32) {
    %c0_i32 = arith.constant 0 : i32
    %c0_i32_0 = arith.constant 0 : i32
    return %arg0, %c0_i32 : i32, i32
  }
  func.func @transform_12(%arg0: i32) -> (i32, i32) {
    %c0_i32 = arith.constant 0 : i32
    %c0_i32_0 = arith.constant 0 : i32
    return %arg0, %c0_i32 : i32, i32
  }
}

</mosaic_0001>

<llo_original>
// kernel: tpu_custom_call.1
$region0: #{tpu_custom_call.1}
  #allocation0 [shape = 'u32[]', space=smem, size = 0x4, offset = 0x4, fixed_abs, tag = 'smem constant byte address 0x4 - core index']
  #allocation1 [shape = 'u32[144,128]{1,0:T(1,128)}', space=vmem, size = 0x12000, scoped, tag = 'internal scratch']
  %s0 = inlined_call_operand.vmem [shape: bf16[8,8,32], index: 0, kind: input, shape index: {}]
  %s1 = inlined_call_operand.vmem [shape: f32[8,8,1], index: 1, kind: input, shape index: {}]
  %s2 = inlined_call_operand.vmem [shape: bf16[32,32], index: 2, kind: input, shape index: {}]
  %s3 = inlined_call_operand.vmem [shape: f32[1,32], index: 3, kind: input, shape index: {}]
  %s4 = inlined_call_operand.vmem [shape: bf16[32,32], index: 4, kind: input, shape index: {}]
  %s5 = inlined_call_operand.vmem [shape: f32[1,32], index: 5, kind: input, shape index: {}]
  %s6 = inlined_call_operand.vmem [shape: bf16[32,128], index: 6, kind: input, shape index: {}]
  %s7 = inlined_call_operand.hbm [shape: f32[1,128], index: 7, kind: input, shape index: {}]
  %s8 = inlined_call_operand.vmem [shape: bf16[32,128], index: 8, kind: input, shape index: {}]
  %s9 = inlined_call_operand.vmem [shape: f32[1,128], index: 9, kind: input, shape index: {}]
  %s10 = inlined_call_operand.hbm [shape: f32[8,32], index: 10, kind: output, shape index: {0}]
  %s11 = inlined_call_operand.hbm [shape: f32[8,128], index: 11, kind: output, shape index: {1}]
  %s12 = inlined_call_operand.hbm [shape: f32[8,128], index: 12, kind: output, shape index: {2}]
  %13 = xla_tuple %s10, %s11, %s12
  %s14 = sld [smem:[#allocation0]]
  $region70: #{tpu_custom_call.1} parent=0
    _
  %s16 = ssub.s32 1, %s14
  %s17 = scalar_select 0, %s16, %s14
  $region1: #{tpu_custom_call.1} parent=0
    #allocation2 [shape = 'u8[512]{0}', space=vmem, size = 0x400, scoped, tag = 'input window, operand 7, single buffered']
    #allocation3 [shape = 's32[1]{0}', space=sflag, size = 0x4, scoped, tag = 'scoped memory for tpu_custom_call.1']
    #allocation4 [shape = 's32[1]{0}', space=sflag, size = 0x4, scoped, tag = 'scoped memory for tpu_custom_call.1']
    #allocation5 [shape = 'u8[4096]{0}', space=vmem, size = 0x1000, scoped, tag = 'output window, operand 0, single buffered']
    #allocation6 [shape = 'u8[4096]{0}', space=vmem, size = 0x1000, scoped, tag = 'output window, operand 1, single buffered']
    #allocation7 [shape = 's32[1]{0}', space=sflag, size = 0x4, scoped, tag = 'scoped memory for tpu_custom_call.1']
    #allocation8 [shape = 'u8[4096]{0}', space=vmem, size = 0x1000, scoped, tag = 'output window, operand 2, single buffered']
    %18 = vsyncpa [#allocation3], 0
    %19 = vsyncpa [#allocation4], 0
    %20 = vsyncpa [#allocation7], 0
    // Predicated region
    $region2: #{tpu_custom_call.1} parent=1 // pred_check
      _
    $region3: #{tpu_custom_call.1} parent=1 // pred_check_branch
      %22 = sbr.rel (0) target = $region5
    $region4: #{tpu_custom_call.1} parent=1 // pred_region
      _
    $region5: #{tpu_custom_call.1} parent=1 // pred_fallthru
      _
    // Predicated region
    $region6: #{tpu_custom_call.1} parent=1 // pred_check
      _
    $region7: #{tpu_custom_call.1} parent=1 // pred_check_branch
      %24 = sbr.rel (0) target = $region9
    $region8: #{tpu_custom_call.1} parent=1 // pred_region
      _
    $region9: #{tpu_custom_call.1} parent=1 // pred_fallthru
      _
    // Predicated region
    $region10: #{tpu_custom_call.1} parent=1 // pred_check
      _
    $region11: #{tpu_custom_call.1} parent=1 // pred_check_branch
      %26 = sbr.rel (0) target = $region13
    $region12: #{tpu_custom_call.1} parent=1 // pred_region
      _
    $region13: #{tpu_custom_call.1} parent=1 // pred_fallthru
      _
    // Predicated region
    $region14: #{tpu_custom_call.1} parent=1 // pred_check
      _
    $region15: #{tpu_custom_call.1} parent=1 // pred_check_branch
      %28 = sbr.rel (0) target = $region17
    $region16: #{tpu_custom_call.1} parent=1 // pred_region
      _
    $region17: #{tpu_custom_call.1} parent=1 // pred_fallthru
      _
    // Predicated region
    $region18: #{tpu_custom_call.1} parent=1 // pred_check
      _
    $region19: #{tpu_custom_call.1} parent=1 // pred_check_branch
      %30 = sbr.rel (0) target = $region21
    $region20: #{tpu_custom_call.1} parent=1 // pred_region
      _
    $region21: #{tpu_custom_call.1} parent=1 // pred_fallthru
      _
    // Predicated region
    $region22: #{tpu_custom_call.1} parent=1 // pred_check
      _
    $region23: #{tpu_custom_call.1} parent=1 // pred_check_branch
      %32 = sbr.rel (0) target = $region25
    $region24: #{tpu_custom_call.1} parent=1 // pred_region
      _
    $region25: #{tpu_custom_call.1} parent=1 // pred_fallthru
      _
    // Predicated region
    $region26: #{tpu_custom_call.1} parent=1 // pred_check
      _
    $region27: #{tpu_custom_call.1} parent=1 // pred_check_branch
      %34 = sbr.rel (0) target = $region29
    $region28: #{tpu_custom_call.1} parent=1 // pred_region
      _
    $region29: #{tpu_custom_call.1} parent=1 // pred_fallthru
      _
    // Predicated region
    $region30: #{tpu_custom_call.1} parent=1 // pred_check
      _
    $region31: #{tpu_custom_call.1} parent=1 // pred_check_branch
      %36 = sbr.rel (0) target = $region33
    $region32: #{tpu_custom_call.1} parent=1 // pred_region
      %s38 = ssub.s32 16, 16
      %39 = vsyncadd [#allocation3], %s38
      %s41 = sshll.u32 [#allocation2], 4
      %s42 = int_to_ptr.vmem [resolvable:$true] %s41
      %44 = dma.hbm_to_vmem [thread:$0]  %s7, 16, %s42, [#allocation3]
    $region33: #{tpu_custom_call.1} parent=1 // pred_fallthru
      _
    // Predicated region
    $region34: #{tpu_custom_call.1} parent=1 // pred_check
      _
    $region35: #{tpu_custom_call.1} parent=1 // pred_check_branch
      %46 = sbr.rel (0) target = $region37
    $region36: #{tpu_custom_call.1} parent=1 // pred_region
      _
    $region37: #{tpu_custom_call.1} parent=1 // pred_fallthru
      _
    // Predicated region
    $region38: #{tpu_custom_call.1} parent=1 // pred_check
      _
    $region39: #{tpu_custom_call.1} parent=1 // pred_check_branch
      %48 = sbr.rel (0) target = $region41
    $region40: #{tpu_custom_call.1} parent=1 // pred_region
      _
    $region41: #{tpu_custom_call.1} parent=1 // pred_fallthru
      _
    // Predicated region
    $region42: #{tpu_custom_call.1} parent=1 // pred_check
      _
    $region43: #{tpu_custom_call.1} parent=1 // pred_check_branch
      %50 = sbr.rel (0) target = $region45
    $region44: #{tpu_custom_call.1} parent=1 // pred_region
      %51 = dma.done [#allocation3], 16
    $region45: #{tpu_custom_call.1} parent=1 // pred_fallthru
      _
    %v53 = vld [vmem:[%s0] sm:$0xf]
    %v54 = vld [vmem:[%s0 + $0x4] sm:$0xf]
    %v55 = vld [vmem:[%s0 + $0x8] sm:$0xf]
    %v56 = vld [vmem:[%s0 + $0xc] sm:$0xf]
    %v57 = vld [vmem:[%s0 + $0x10] sm:$0xf]
    %v58 = vld [vmem:[%s0 + $0x14] sm:$0xf]
    %v59 = vld [vmem:[%s0 + $0x18] sm:$0xf]
    %v60 = vld [vmem:[%s0 + $0x1c] sm:$0xf]
    %v61 = vunpack.c.l.bf16 %v53
    %v62 = vunpack.c.l.bf16 %v54
    %v63 = vunpack.c.l.bf16 %v55
    %v64 = vunpack.c.l.bf16 %v56
    %v65 = vunpack.c.l.bf16 %v57
    %v66 = vunpack.c.l.bf16 %v58
    %v67 = vunpack.c.l.bf16 %v59
    %v68 = vunpack.c.l.bf16 %v60
    %v69 = vld [vmem:[%s1] sm:$0xff]
    %v70 = vld [vmem:[%s1 + $0x8] sm:$0xff]
    %v71 = vld [vmem:[%s1 + $0x10] sm:$0xff]
    %v72 = vld [vmem:[%s1 + $0x18] sm:$0xff]
    %v73 = vld [vmem:[%s1 + $0x20] sm:$0xff]
    %v74 = vld [vmem:[%s1 + $0x28] sm:$0xff]
    %v75 = vld [vmem:[%s1 + $0x30] sm:$0xff]
    %v76 = vld [vmem:[%s1 + $0x38] sm:$0xff]
    %78 = vset.pattern.permute.xlu0 0
    %79 = vperm.xlu0 %78, %v69
    %v80 = vpop.permute.xlu0 %79
    %83 = vset.pattern.permute.xlu0 0
    %84 = vperm.xlu0 %83, %v70
    %v85 = vpop.permute.xlu0 %84
    %88 = vset.pattern.permute.xlu0 0
    %89 = vperm.xlu0 %88, %v71
    %v90 = vpop.permute.xlu0 %89
    %93 = vset.pattern.permute.xlu0 0
    %94 = vperm.xlu0 %93, %v72
    %v95 = vpop.permute.xlu0 %94
    %98 = vset.pattern.permute.xlu0 0
    %99 = vperm.xlu0 %98, %v73
    %v100 = vpop.permute.xlu0 %99
    %103 = vset.pattern.permute.xlu0 0
    %104 = vperm.xlu0 %103, %v74
    %v105 = vpop.permute.xlu0 %104
    %108 = vset.pattern.permute.xlu0 0
    %109 = vperm.xlu0 %108, %v75
    %v110 = vpop.permute.xlu0 %109
    %113 = vset.pattern.permute.xlu0 0
    %114 = vperm.xlu0 %113, %v76
    %v115 = vpop.permute.xlu0 %114
    %v117 = vmul.f32 %v61, %v80
    %v118 = vmul.f32 %v62, %v85
    %v119 = vmul.f32 %v63, %v90
    %v120 = vmul.f32 %v64, %v95
    %v121 = vmul.f32 %v65, %v100
    %v122 = vmul.f32 %v66, %v105
    %v123 = vmul.f32 %v67, %v110
    %v124 = vmul.f32 %v68, %v115
    %vm125 = vcmask 261120
    %v126 = vsel %vm125, %v117, 0.0
    %v127 = vrot.slane %v126, 4
    %v128 = vadd.f32 %v126, %v127
    %v129 = vrot.slane %v128, 2
    %v130 = vadd.f32 %v128, %v129
    %v131 = vrot.slane %v130, 1
    %v132 = vadd.f32 %v130, %v131
    %v133 = vsel %vm125, %v118, 0.0
    %v134 = vrot.slane %v133, 4
    %v135 = vadd.f32 %v133, %v134
    %v136 = vrot.slane %v135, 2
    %v137 = vadd.f32 %v135, %v136
    %v138 = vrot.slane %v137, 1
    %v139 = vadd.f32 %v137, %v138
    %v140 = vsel %vm125, %v119, 0.0
    %v141 = vrot.slane %v140, 4
    %v142 = vadd.f32 %v140, %v141
    %v143 = vrot.slane %v142, 2
    %v144 = vadd.f32 %v142, %v143
    %v145 = vrot.slane %v144, 1
    %v146 = vadd.f32 %v144, %v145
    %v147 = vsel %vm125, %v120, 0.0
    %v148 = vrot.slane %v147, 4
    %v149 = vadd.f32 %v147, %v148
    %v150 = vrot.slane %v149, 2
    %v151 = vadd.f32 %v149, %v150
    %v152 = vrot.slane %v151, 1
    %v153 = vadd.f32 %v151, %v152
    %v154 = vsel %vm125, %v121, 0.0
    %v155 = vrot.slane %v154, 4
    %v156 = vadd.f32 %v154, %v155
    %v157 = vrot.slane %v156, 2
    %v158 = vadd.f32 %v156, %v157
    %v159 = vrot.slane %v158, 1
    %v160 = vadd.f32 %v158, %v159
    %v161 = vsel %vm125, %v122, 0.0
    %v162 = vrot.slane %v161, 4
    %v163 = vadd.f32 %v161, %v162
    %v164 = vrot.slane %v163, 2
    %v165 = vadd.f32 %v163, %v164
    %v166 = vrot.slane %v165, 1
    %v167 = vadd.f32 %v165, %v166
    %v168 = vsel %vm125, %v123, 0.0
    %v169 = vrot.slane %v168, 4
    %v170 = vadd.f32 %v168, %v169
    %v171 = vrot.slane %v170, 2
    %v172 = vadd.f32 %v170, %v171
    %v173 = vrot.slane %v172, 1
    %v174 = vadd.f32 %v172, %v173
    %v175 = vsel %vm125, %v124, 0.0
    %v176 = vrot.slane %v175, 4
    %v177 = vadd.f32 %v175, %v176
    %v178 = vrot.slane %v177, 2
    %v179 = vadd.f32 %v177, %v178
    %v180 = vrot.slane %v179, 1
    %v181 = vadd.f32 %v179, %v180
    %vm182 = vcmask 7168
    %v183 = vsel %vm182, %v69, 0.0
    %v184 = vrot.slane %v183, 4
    %v185 = vadd.f32 %v183, %v184
    %v186 = vrot.slane %v185, 2
    %v187 = vadd.f32 %v185, %v186
    %v188 = vrot.slane %v187, 1
    %v189 = vadd.f32 %v187, %v188
    %v190 = vsel %vm182, %v70, 0.0
    %v191 = vrot.slane %v190, 4
    %v192 = vadd.f32 %v190, %v191
    %v193 = vrot.slane %v192, 2
    %v194 = vadd.f32 %v192, %v193
    %v195 = vrot.slane %v194, 1
    %v196 = vadd.f32 %v194, %v195
    %v197 = vsel %vm182, %v71, 0.0
    %v198 = vrot.slane %v197, 4
    %v199 = vadd.f32 %v197, %v198
    %v200 = vrot.slane %v199, 2
    %v201 = vadd.f32 %v199, %v200
    %v202 = vrot.slane %v201, 1
    %v203 = vadd.f32 %v201, %v202
    %v204 = vsel %vm182, %v72, 0.0
    %v205 = vrot.slane %v204, 4
    %v206 = vadd.f32 %v204, %v205
    %v207 = vrot.slane %v206, 2
    %v208 = vadd.f32 %v206, %v207
    %v209 = vrot.slane %v208, 1
    %v210 = vadd.f32 %v208, %v209
    %v211 = vsel %vm182, %v73, 0.0
    %v212 = vrot.slane %v211, 4
    %v213 = vadd.f32 %v211, %v212
    %v214 = vrot.slane %v213, 2
    %v215 = vadd.f32 %v213, %v214
    %v216 = vrot.slane %v215, 1
    %v217 = vadd.f32 %v215, %v216
    %v218 = vsel %vm182, %v74, 0.0
    %v219 = vrot.slane %v218, 4
    %v220 = vadd.f32 %v218, %v219
    %v221 = vrot.slane %v220, 2
    %v222 = vadd.f32 %v220, %v221
    %v223 = vrot.slane %v222, 1
    %v224 = vadd.f32 %v222, %v223
    %v225 = vsel %vm182, %v75, 0.0
    %v226 = vrot.slane %v225, 4
    %v227 = vadd.f32 %v225, %v226
    %v228 = vrot.slane %v227, 2
    %v229 = vadd.f32 %v227, %v228
    %v230 = vrot.slane %v229, 1
    %v231 = vadd.f32 %v229, %v230
    %v232 = vsel %vm182, %v76, 0.0
    %v233 = vrot.slane %v232, 4
    %v234 = vadd.f32 %v232, %v233
    %v235 = vrot.slane %v234, 2
    %v236 = vadd.f32 %v234, %v235
    %v237 = vrot.slane %v236, 1
    %v238 = vadd.f32 %v236, %v237
    %240 = vset.pattern.permute.xlu0 0
    %241 = vperm.xlu0 %240, %v189
    %v242 = vpop.permute.xlu0 %241
    %245 = vset.pattern.permute.xlu0 0
    %246 = vperm.xlu0 %245, %v196
    %v247 = vpop.permute.xlu0 %246
    %250 = vset.pattern.permute.xlu0 0
    %251 = vperm.xlu0 %250, %v203
    %v252 = vpop.permute.xlu0 %251
    %255 = vset.pattern.permute.xlu0 0
    %256 = vperm.xlu0 %255, %v210
    %v257 = vpop.permute.xlu0 %256
    %260 = vset.pattern.permute.xlu0 0
    %261 = vperm.xlu0 %260, %v217
    %v262 = vpop.permute.xlu0 %261
    %265 = vset.pattern.permute.xlu0 0
    %266 = vperm.xlu0 %265, %v224
    %v267 = vpop.permute.xlu0 %266
    %270 = vset.pattern.permute.xlu0 0
    %271 = vperm.xlu0 %270, %v231
    %v272 = vpop.permute.xlu0 %271
    %275 = vset.pattern.permute.xlu0 0
    %276 = vperm.xlu0 %275, %v238
    %v277 = vpop.permute.xlu0 %276
    %v279 = vrcp.pop %v242
    %v280 = vmul.f32 %v132, %v279
    %v281 = vrcp.pop %v247
    %v282 = vmul.f32 %v139, %v281
    %v283 = vrcp.pop %v252
    %v284 = vmul.f32 %v146, %v283
    %v285 = vrcp.pop %v257
    %v286 = vmul.f32 %v153, %v285
    %v287 = vrcp.pop %v262
    %v288 = vmul.f32 %v160, %v287
    %v289 = vrcp.pop %v267
    %v290 = vmul.f32 %v167, %v289
    %v291 = vrcp.pop %v272
    %v292 = vmul.f32 %v174, %v291
    %v293 = vrcp.pop %v277
    %v294 = vmul.f32 %v181, %v293
    %vm303 = vcmask 1041409
    %v304 = vsel %vm303, %v282, %v280
    %vm305 = vcmask 1042434
    %v306 = vsel %vm305, %v284, %v304
    %vm307 = vcmask 1043459
    %v308 = vsel %vm307, %v286, %v306
    %vm309 = vcmask 1044484
    %v310 = vsel %vm309, %v288, %v308
    %vm311 = vcmask 1045509
    %v312 = vsel %vm311, %v290, %v310
    %vm313 = vcmask 1046534
    %v314 = vsel %vm313, %v292, %v312
    %vm315 = vcmask 1047559
    %v316 = vsel %vm315, %v294, %v314
    %318 = vst.msk [vmem:[#allocation5] sm:$0xff] %vm125, %v316
    %v319 = vpack.c.bf16 %v280, %v280
    %v320 = vpack.c.bf16 %v282, %v282
    %v321 = vpack.c.bf16 %v284, %v284
    %v322 = vpack.c.bf16 %v286, %v286
    %v323 = vpack.c.bf16 %v288, %v288
    %v324 = vpack.c.bf16 %v290, %v290
    %v325 = vpack.c.bf16 %v292, %v292
    %v326 = vpack.c.bf16 %v294, %v294
    %v327 = vld [vmem:[%s2] sm:$0xf]
    %v328 = vld [vmem:[%s2 + $0x4] sm:$0xf]
    %v329 = vld [vmem:[%s2 + $0x8] sm:$0xf]
    %v330 = vld [vmem:[%s2 + $0xc] sm:$0xf]
    %v331 = vld [vmem:[%s3] sm:$0x1]
    %v333 = vlaneseq
    %v334 = vshrl.u32 %v333, 7
    %v335 = vsub.s32 0, %v334
    %v336 = vrot.slane %v331, %v335
    %v346 = vunpack.c.l.b16 %v319
    %v347 = vunpack.c.l.b16 %v320
    %v348 = vunpack.c.l.b16 %v321
    %v349 = vunpack.c.l.b16 %v322
    %v350 = vunpack.c.l.b16 %v323
    %v351 = vunpack.c.l.b16 %v324
    %v352 = vunpack.c.l.b16 %v325
    %v353 = vunpack.c.l.b16 %v326
    %v354 = vsel %vm303, %v347, %v346
    %v355 = vsel %vm305, %v348, %v354
    %v356 = vsel %vm307, %v349, %v355
    %v357 = vsel %vm309, %v350, %v356
    %v358 = vsel %vm311, %v351, %v357
    %v359 = vsel %vm313, %v352, %v358
    %v360 = vsel %vm315, %v353, %v359
    %v361 = vpack.c.b16 %v360, %v360
    %v366 = vunpack.c.l.b16 %v327
    %v367 = vunpack.c.l.b16 %v328
    %v368 = vunpack.c.l.b16 %v329
    %v369 = vunpack.c.l.b16 %v330
    %v370 = vpack.c.b16 %v367, %v366
    %v371 = vpack.c.b16 %v369, %v368
    %v375 = vsel %vm125, %v361, 0
    %377 = vmatprep.subr.bf16.mxu0 0
    %378 = vmatpush1.bf16.msra.mxu0 %v370
    %379 = vmatprep.subr.bf16.mxu0 0
    %380 = vmatpush1.bf16.msra.mxu0 %v371
    %381 = vmatprep.subr.bf16.mxu0 0
    %382 = vmatpush1.bf16.msra.mxu0 0
    %383 = vmatprep.subr.bf16.mxu0 0
    %384 = vmatpush1.bf16.msra.mxu0 0
    %385 = vmatprep.subr.bf16.mxu0 0
    %386 = vmatpush1.bf16.msra.mxu0 0
    %387 = vmatprep.subr.bf16.mxu0 0
    %388 = vmatpush1.bf16.msra.mxu0 0
    %389 = vmatprep.subr.bf16.mxu0 0
    %390 = vmatpush1.bf16.msra.mxu0 0
    %391 = vmatprep.subr.bf16.mxu0 0
    %392 = vmatpush1.bf16.msra.mxu0 0
    %393 = vmatprep.subr.bf16.mxu0 0
    %394 = vmatpush1.bf16.msra.mxu0 0
    %395 = vmatprep.subr.bf16.mxu0 0
    %396 = vmatpush1.bf16.msra.mxu0 0
    %397 = vmatprep.subr.bf16.mxu0 0
    %398 = vmatpush1.bf16.msra.mxu0 0
    %399 = vmatprep.subr.bf16.mxu0 0
    %400 = vmatpush1.bf16.msra.mxu0 0
    %401 = vmatprep.subr.bf16.mxu0 0
    %402 = vmatpush1.bf16.msra.mxu0 0
    %403 = vmatprep.subr.bf16.mxu0 0
    %404 = vmatpush1.bf16.msra.mxu0 0
    %405 = vmatprep.subr.bf16.mxu0 0
    %406 = vmatpush1.bf16.msra.mxu0 0
    %407 = vmatprep.subr.bf16.mxu0 0
    %408 = vmatpush1.bf16.msra.mxu0 0
    %409 = vmatprep.mubr.bf16.mxu0 0
    %410 = vmatmul.mubr.bf16.gmra.mrb[0].mxu0 %v375
    %v411 = vpop.f32.mrb[0].mxu0
    %v412 = vadd.f32 %v336, %v411
    %v413 = vpop.f32.mrb[0].mxu0
    %v414 = vpop.f32.mrb[0].mxu0
    %v415 = vpop.f32.mrb[0].mxu0
    %416 = vdwg.mxu0
    %v417 = vmax.f32 %v412, 0.0
    %v418 = vpack.c.bf16 %v417, %v417
    %v419 = vld [vmem:[%s6] sm:$0xf]
    %v420 = vld [vmem:[%s6 + $0x4] sm:$0xf]
    %v421 = vld [vmem:[%s6 + $0x8] sm:$0xf]
    %v422 = vld [vmem:[%s6 + $0xc] sm:$0xf]
    %v423 = vld [vmem:[#allocation2] sm:$0x1]
    %v425 = vlaneseq
    %v426 = vshrl.u32 %v425, 7
    %v427 = vsub.s32 0, %v426
    %v428 = vrot.slane %v423, %v427
    %v434 = vunpack.c.l.b16 %v419
    %v435 = vunpack.c.l.b16 %v420
    %v436 = vunpack.c.l.b16 %v421
    %v437 = vunpack.c.l.b16 %v422
    %v438 = vpack.c.b16 %v435, %v434
    %v439 = vpack.c.b16 %v437, %v436
    %v443 = vsel %vm125, %v418, 0
    %445 = vmatprep.subr.bf16.mxu0 0
    %446 = vmatpush1.bf16.msra.mxu0 %v438
    %447 = vmatprep.subr.bf16.mxu0 0
    %448 = vmatpush1.bf16.msra.mxu0 %v439
    %449 = vmatprep.subr.bf16.mxu0 0
    %450 = vmatpush1.bf16.msra.mxu0 0
    %451 = vmatprep.subr.bf16.mxu0 0
    %452 = vmatpush1.bf16.msra.mxu0 0
    %453 = vmatprep.subr.bf16.mxu0 0
    %454 = vmatpush1.bf16.msra.mxu0 0
    %455 = vmatprep.subr.bf16.mxu0 0
    %456 = vmatpush1.bf16.msra.mxu0 0
    %457 = vmatprep.subr.bf16.mxu0 0
    %458 = vmatpush1.bf16.msra.mxu0 0
    %459 = vmatprep.subr.bf16.mxu0 0
    %460 = vmatpush1.bf16.msra.mxu0 0
    %461 = vmatprep.subr.bf16.mxu0 0
    %462 = vmatpush1.bf16.msra.mxu0 0
    %463 = vmatprep.subr.bf16.mxu0 0
    %464 = vmatpush1.bf16.msra.mxu0 0
    %465 = vmatprep.subr.bf16.mxu0 0
    %466 = vmatpush1.bf16.msra.mxu0 0
    %467 = vmatprep.subr.bf16.mxu0 0
    %468 = vmatpush1.bf16.msra.mxu0 0
    %469 = vmatprep.subr.bf16.mxu0 0
    %470 = vmatpush1.bf16.msra.mxu0 0
    %471 = vmatprep.subr.bf16.mxu0 0
    %472 = vmatpush1.bf16.msra.mxu0 0
    %473 = vmatprep.subr.bf16.mxu0 0
    %474 = vmatpush1.bf16.msra.mxu0 0
    %475 = vmatprep.subr.bf16.mxu0 0
    %476 = vmatpush1.bf16.msra.mxu0 0
    %477 = vmatprep.mubr.bf16.mxu0 0
    %478 = vmatmul.mubr.bf16.gmra.mrb[0].mxu0 %v443
    %v479 = vpop.f32.mrb[0].mxu0
    %v480 = vadd.f32 %v428, %v479
    %v481 = vpop.f32.mrb[0].mxu0
    %v482 = vpop.f32.mrb[0].mxu0
    %v483 = vpop.f32.mrb[0].mxu0
    %484 = vdwg.mxu0
    %v485 = vmul.f32 %v480, %v480
    %486 = vadd.xlane.f32.xlu0 %v485
    %v487 = vpop.xlane.xlu0 %486
    %v488 = vmax.f32 %v487, 1e-24
    %v489 = vrsqrt.pop %v488
    %v490 = vmul.f32 %v480, %v489
    %491 = vst [vmem:[#allocation6] sm:$0xff] %v490
    %v492 = vld [vmem:[%s4] sm:$0xf]
    %v493 = vld [vmem:[%s4 + $0x4] sm:$0xf]
    %v494 = vld [vmem:[%s4 + $0x8] sm:$0xf]
    %v495 = vld [vmem:[%s4 + $0xc] sm:$0xf]
    %v496 = vld [vmem:[%s5] sm:$0x1]
    %v498 = vlaneseq
    %v499 = vshrl.u32 %v498, 7
    %v500 = vsub.s32 0, %v499
    %v501 = vrot.slane %v496, %v500
    %v507 = vunpack.c.l.b16 %v492
    %v508 = vunpack.c.l.b16 %v493
    %v509 = vunpack.c.l.b16 %v494
    %v510 = vunpack.c.l.b16 %v495
    %v511 = vpack.c.b16 %v508, %v507
    %v512 = vpack.c.b16 %v510, %v509
    %515 = vmatprep.subr.bf16.mxu0 0
    %516 = vmatpush1.bf16.msra.mxu0 %v511
    %517 = vmatprep.subr.bf16.mxu0 0
    %518 = vmatpush1.bf16.msra.mxu0 %v512
    %519 = vmatprep.subr.bf16.mxu0 0
    %520 = vmatpush1.bf16.msra.mxu0 0
    %521 = vmatprep.subr.bf16.mxu0 0
    %522 = vmatpush1.bf16.msra.mxu0 0
    %523 = vmatprep.subr.bf16.mxu0 0
    %524 = vmatpush1.bf16.msra.mxu0 0
    %525 = vmatprep.subr.bf16.mxu0 0
    %526 = vmatpush1.bf16.msra.mxu0 0
    %527 = vmatprep.subr.bf16.mxu0 0
    %528 = vmatpush1.bf16.msra.mxu0 0
    %529 = vmatprep.subr.bf16.mxu0 0
    %530 = vmatpush1.bf16.msra.mxu0 0
    %531 = vmatprep.subr.bf16.mxu0 0
    %532 = vmatpush1.bf16.msra.mxu0 0
    %533 = vmatprep.subr.bf16.mxu0 0
    %534 = vmatpush1.bf16.msra.mxu0 0
    %535 = vmatprep.subr.bf16.mxu0 0
    %536 = vmatpush1.bf16.msra.mxu0 0
    %537 = vmatprep.subr.bf16.mxu0 0
    %538 = vmatpush1.bf16.msra.mxu0 0
    %539 = vmatprep.subr.bf16.mxu0 0
    %540 = vmatpush1.bf16.msra.mxu0 0
    %541 = vmatprep.subr.bf16.mxu0 0
    %542 = vmatpush1.bf16.msra.mxu0 0
    %543 = vmatprep.subr.bf16.mxu0 0
    %544 = vmatpush1.bf16.msra.mxu0 0
    %545 = vmatprep.subr.bf16.mxu0 0
    %546 = vmatpush1.bf16.msra.mxu0 0
    %547 = vmatprep.mubr.bf16.mxu0 0
    %548 = vmatmul.mubr.bf16.gmra.mrb[0].mxu0 %v375
    %v549 = vpop.f32.mrb[0].mxu0
    %v550 = vadd.f32 %v501, %v549
    %v551 = vpop.f32.mrb[0].mxu0
    %v552 = vpop.f32.mrb[0].mxu0
    %v553 = vpop.f32.mrb[0].mxu0
    %554 = vdwg.mxu0
    %v555 = vmax.f32 %v550, 0.0
    %v556 = vpack.c.bf16 %v555, %v555
    %v557 = vld [vmem:[%s8] sm:$0xf]
    %v558 = vld [vmem:[%s8 + $0x4] sm:$0xf]
    %v559 = vld [vmem:[%s8 + $0x8] sm:$0xf]
    %v560 = vld [vmem:[%s8 + $0xc] sm:$0xf]
    %v561 = vld [vmem:[%s9] sm:$0x1]
    %v563 = vlaneseq
    %v564 = vshrl.u32 %v563, 7
    %v565 = vsub.s32 0, %v564
    %v566 = vrot.slane %v561, %v565
    %v572 = vunpack.c.l.b16 %v557
    %v573 = vunpack.c.l.b16 %v558
    %v574 = vunpack.c.l.b16 %v559
    %v575 = vunpack.c.l.b16 %v560
    %v576 = vpack.c.b16 %v573, %v572
    %v577 = vpack.c.b16 %v575, %v574
    %v581 = vsel %vm125, %v556, 0
    %583 = vmatprep.subr.bf16.mxu0 0
    %584 = vmatpush1.bf16.msra.mxu0 %v576
    %585 = vmatprep.subr.bf16.mxu0 0
    %586 = vmatpush1.bf16.msra.mxu0 %v577
    %587 = vmatprep.subr.bf16.mxu0 0
    %588 = vmatpush1.bf16.msra.mxu0 0
    %589 = vmatprep.subr.bf16.mxu0 0
    %590 = vmatpush1.bf16.msra.mxu0 0
    %591 = vmatprep.subr.bf16.mxu0 0
    %592 = vmatpush1.bf16.msra.mxu0 0
    %593 = vmatprep.subr.bf16.mxu0 0
    %594 = vmatpush1.bf16.msra.mxu0 0
    %595 = vmatprep.subr.bf16.mxu0 0
    %596 = vmatpush1.bf16.msra.mxu0 0
    %597 = vmatprep.subr.bf16.mxu0 0
    %598 = vmatpush1.bf16.msra.mxu0 0
    %599 = vmatprep.subr.bf16.mxu0 0
    %600 = vmatpush1.bf16.msra.mxu0 0
    %601 = vmatprep.subr.bf16.mxu0 0
    %602 = vmatpush1.bf16.msra.mxu0 0
    %603 = vmatprep.subr.bf16.mxu0 0
    %604 = vmatpush1.bf16.msra.mxu0 0
    %605 = vmatprep.subr.bf16.mxu0 0
    %606 = vmatpush1.bf16.msra.mxu0 0
    %607 = vmatprep.subr.bf16.mxu0 0
    %608 = vmatpush1.bf16.msra.mxu0 0
    %609 = vmatprep.subr.bf16.mxu0 0
    %610 = vmatpush1.bf16.msra.mxu0 0
    %611 = vmatprep.subr.bf16.mxu0 0
    %612 = vmatpush1.bf16.msra.mxu0 0
    %613 = vmatprep.subr.bf16.mxu0 0
    %614 = vmatpush1.bf16.msra.mxu0 0
    %615 = vmatprep.mubr.bf16.mxu0 0
    %616 = vmatmul.mubr.bf16.gmra.mrb[0].mxu0 %v581
    %v617 = vpop.f32.mrb[0].mxu0
    %v618 = vadd.f32 %v566, %v617
    %v619 = vpop.f32.mrb[0].mxu0
    %v620 = vpop.f32.mrb[0].mxu0
    %v621 = vpop.f32.mrb[0].mxu0
    %622 = vdwg.mxu0
    %623 = vmax.xlane.f32.xlu0 %v618
    %v624 = vpop.xlane.xlu0 %623
    %v625 = vsub.f32 %v618, %v624
    %v626 = vmul.f32 %v625, 1.442695
    %v627 = vpow.pop %v626
    %628 = vadd.xlane.f32.xlu0 %v627
    %v629 = vpop.xlane.xlu0 %628
    %v630 = vrcp.pop %v629
    %v631 = vmul.f32 %v627, %v630
    %632 = vst [vmem:[#allocation8] sm:$0xff] %v631
    // Predicated region
    $region46: #{tpu_custom_call.1} parent=1 // pred_check
      _
    $region47: #{tpu_custom_call.1} parent=1 // pred_check_branch
      %634 = sbr.rel (0) target = $region49
    $region48: #{tpu_custom_call.1} parent=1 // pred_region
      %s636 = ssub.s32 128, 128
      %637 = vsyncadd [#allocation4], %s636
      %s639 = sshll.u32 [#allocation5], 4
      %s640 = int_to_ptr.vmem [resolvable:$true] %s639
      %642 = dma.vmem_to_hbm [thread:$0]  %s640, 128, %s10, [#allocation4]
    $region49: #{tpu_custom_call.1} parent=1 // pred_fallthru
      _
    // Predicated region
    $region50: #{tpu_custom_call.1} parent=1 // pred_check
      _
    $region51: #{tpu_custom_call.1} parent=1 // pred_check_branch
      %644 = sbr.rel (0) target = $region53
    $region52: #{tpu_custom_call.1} parent=1 // pred_region
      %s646 = ssub.s32 128, 128
      %647 = vsyncadd [#allocation7], %s646
      %s649 = sshll.u32 [#allocation6], 4
      %s650 = int_to_ptr.vmem [resolvable:$true] %s649
      %652 = dma.vmem_to_hbm [thread:$0]  %s650, 128, %s11, [#allocation7]
    $region53: #{tpu_custom_call.1} parent=1 // pred_fallthru
      _
    // Predicated region
    $region54: #{tpu_custom_call.1} parent=1 // pred_check
      _
    $region55: #{tpu_custom_call.1} parent=1 // pred_check_branch
      %654 = sbr.rel (0) target = $region57
    $region56: #{tpu_custom_call.1} parent=1 // pred_region
      %s656 = ssub.s32 128, 128
      %657 = vsyncadd [#allocation7], %s656
      %s659 = sshll.u32 [#allocation8], 4
      %s660 = int_to_ptr.vmem [resolvable:$true] %s659
      %662 = dma.vmem_to_hbm [thread:$0]  %s660, 128, %s12, [#allocation7]
    $region57: #{tpu_custom_call.1} parent=1 // pred_fallthru
      _
    // Predicated region
    $region58: #{tpu_custom_call.1} parent=1 // pred_check
      _
    $region59: #{tpu_custom_call.1} parent=1 // pred_check_branch
      %664 = sbr.rel (0) target = $region61
    $region60: #{tpu_custom_call.1} parent=1 // pred_region
      %665 = dma.done [#allocation4], 128
    $region61: #{tpu_custom_call.1} parent=1 // pred_fallthru
      _
    // Predicated region
    $region62: #{tpu_custom_call.1} parent=1 // pred_check
      _
    $region63: #{tpu_custom_call.1} parent=1 // pred_check_branch
      %667 = sbr.rel (0) target = $region65
    $region64: #{tpu_custom_call.1} parent=1 // pred_region
      %668 = dma.done [#allocation7], 128
    $region65: #{tpu_custom_call.1} parent=1 // pred_fallthru
      _
    // Predicated region
    $region66: #{tpu_custom_call.1} parent=1 // pred_check
      _
    $region67: #{tpu_custom_call.1} parent=1 // pred_check_branch
      %670 = sbr.rel (0) target = $region69
    $region68: #{tpu_custom_call.1} parent=1 // pred_region
      %671 = dma.done [#allocation7], 128
    $region69: #{tpu_custom_call.1} parent=1 // pred_fallthru
      _
    %672 = vsyncpa [#allocation3], 1
    %673 = vsyncpa [#allocation4], 1
    %674 = vsyncpa [#allocation7], 1

// kernel: tpu_custom_call.1
$region0: #{tpu_custom_call.1}
  #allocation0 [shape = 'u32[]', space=smem, size = 0x4, offset = 0x4, fixed_abs, tag = 'smem constant byte address 0x4 - core index']
  #allocation1 [shape = 'u32[144,128]{1,0:T(1,128)}', space=vmem, size = 0x12000, scoped, tag = 'internal scratch']
  %s0 = inlined_call_operand.vmem [shape: bf16[8,8,32], index: 0, kind: input, shape index: {}]
  %s1 = inlined_call_operand.vmem [shape: f32[8,8,1], index: 1, kind: input, shape index: {}]
  %s2 = inlined_call_operand.vmem [shape: bf16[32,32], index: 2, kind: input, shape index: {}]
  %s3 = inlined_call_operand.vmem [shape: f32[1,32], index: 3, kind: input, shape index: {}]
  %s4 = inlined_call_operand.vmem [shape: bf16[32,32], index: 4, kind: input, shape index: {}]
  %s5 = inlined_call_operand.vmem [shape: f32[1,32], index: 5, kind: input, shape index: {}]
  %s6 = inlined_call_operand.vmem [shape: bf16[32,128], index: 6, kind: input, shape index: {}]
  %s7 = inlined_call_operand.hbm [shape: f32[1,128], index: 7, kind: input, shape index: {}]
  %s8 = inlined_call_operand.vmem [shape: bf16[32,128], index: 8, kind: input, shape index: {}]
  %s9 = inlined_call_operand.vmem [shape: f32[1,128], index: 9, kind: input, shape index: {}]
  %s10 = inlined_call_operand.hbm [shape: f32[8,32], index: 10, kind: output, shape index: {0}]
  %s11 = inlined_call_operand.hbm [shape: f32[8,128], index: 11, kind: output, shape index: {1}]
  %s12 = inlined_call_operand.hbm [shape: f32[8,128], index: 12, kind: output, shape index: {2}]
  %13 = xla_tuple %s10, %s11, %s12
  %s14 = sld [smem:[#allocation0]]
  $region70: #{tpu_custom_call.1} parent=0
    _
  %s16 = ssub.s32 1, %s14
  %s17 = scalar_select 0, %s16, %s14
  $region1: #{tpu_custom_call.1} parent=0
    #allocation2 [shape = 'u8[512]{0}', space=vmem, size = 0x400, scoped, tag = 'input window, operand 7, single buffered']
    #allocation3 [shape = 's32[1]{0}', space=sflag, size = 0x4, scoped, tag = 'scoped memory for tpu_custom_call.1']
    #allocation4 [shape = 's32[1]{0}', space=sflag, size = 0x4, scoped, tag = 'scoped memory for tpu_custom_call.1']
    #allocation5 [shape = 'u8[4096]{0}', space=vmem, size = 0x1000, scoped, tag = 'output window, operand 0, single buffered']
    #allocation6 [shape = 'u8[4096]{0}', space=vmem, size = 0x1000, scoped, tag = 'output window, operand 1, single buffered']
    #allocation7 [shape = 's32[1]{0}', space=sflag, size = 0x4, scoped, tag = 'scoped memory for tpu_custom_call.1']
    #allocation8 [shape = 'u8[4096]{0}', space=vmem, size = 0x1000, scoped, tag = 'output window, operand 2, single buffered']
    %18 = vsyncpa [#allocation3], 0
    %19 = vsyncpa [#allocation4], 0
    %20 = vsyncpa [#allocation7], 0
    // Predicated region
    $region2: #{tpu_custom_call.1} parent=1 // pred_check
      _
    $region3: #{tpu_custom_call.1} parent=1 // pred_check_branch
      %22 = sbr.rel (0) target = $region5
    $region4: #{tpu_custom_call.1} parent=1 // pred_region
      _
    $region5: #{tpu_custom_call.1} parent=1 // pred_fallthru
      _
    // Predicated region
    $region6: #{tpu_custom_call.1} parent=1 // pred_check
      _
    $region7: #{tpu_custom_call.1} parent=1 // pred_check_branch
      %24 = sbr.rel (0) target = $region9
    $region8: #{tpu_custom_call.1} parent=1 // pred_region
      _
    $region9: #{tpu_custom_call.1} parent=1 // pred_fallthru
      _
    // Predicated region
    $region10: #{tpu_custom_call.1} parent=1 // pred_check
      _
    $region11: #{tpu_custom_call.1} parent=1 // pred_check_branch
      %26 = sbr.rel (0) target = $region13
    $region12: #{tpu_custom_call.1} parent=1 // pred_region
      _
    $region13: #{tpu_custom_call.1} parent=1 // pred_fallthru
      _
    // Predicated region
    $region14: #{tpu_custom_call.1} parent=1 // pred_check
      _
    $region15: #{tpu_custom_call.1} parent=1 // pred_check_branch
      %28 = sbr.rel (0) target = $region17
    $region16: #{tpu_custom_call.1} parent=1 // pred_region
      _
    $region17: #{tpu_custom_call.1} parent=1 // pred_fallthru
      _
    // Predicated region
    $region18: #{tpu_custom_call.1} parent=1 // pred_check
      _
    $region19: #{tpu_custom_call.1} parent=1 // pred_check_branch
      %30 = sbr.rel (0) target = $region21
    $region20: #{tpu_custom_call.1} parent=1 // pred_region
      _
    $region21: #{tpu_custom_call.1} parent=1 // pred_fallthru
      _
    // Predicated region
    $region22: #{tpu_custom_call.1} parent=1 // pred_check
      _
    $region23: #{tpu_custom_call.1} parent=1 // pred_check_branch
      %32 = sbr.rel (0) target = $region25
    $region24: #{tpu_custom_call.1} parent=1 // pred_region
      _
    $region25: #{tpu_custom_call.1} parent=1 // pred_fallthru
      _
    // Predicated region
    $region26: #{tpu_custom_call.1} parent=1 // pred_check
      _
    $region27: #{tpu_custom_call.1} parent=1 // pred_check_branch
      %34 = sbr.rel (0) target = $region29
    $region28: #{tpu_custom_call.1} parent=1 // pred_region
      _
    $region29: #{tpu_custom_call.1} parent=1 // pred_fallthru
      _
    // Predicated region
    $region30: #{tpu_custom_call.1} parent=1 // pred_check
      _
    $region31: #{tpu_custom_call.1} parent=1 // pred_check_branch
      %36 = sbr.rel (0) target = $region33
    $region32: #{tpu_custom_call.1} parent=1 // pred_region
      %s38 = ssub.s32 16, 16
      %39 = vsyncadd [#allocation3], %s38
      %s41 = sshll.u32 [#allocation2], 4
      %s42 = int_to_ptr.vmem [resolvable:$true] %s41
      %44 = dma.hbm_to_vmem [thread:$0]  %s7, 16, %s42, [#allocation3]
    $region33: #{tpu_custom_call.1} parent=1 // pred_fallthru
      _
    // Predicated region
    $region34: #{tpu_custom_call.1} parent=1 // pred_check
      _
    $region35: #{tpu_custom_call.1} parent=1 // pred_check_branch
      %46 = sbr.rel (0) target = $region37
    $region36: #{tpu_custom_call.1} parent=1 // pred_region
      _
    $region37: #{tpu_custom_call.1} parent=1 // pred_fallthru
      _
    // Predicated region
    $region38: #{tpu_custom_call.1} parent=1 // pred_check
      _
    $region39: #{tpu_custom_call.1} parent=1 // pred_check_branch
      %48 = sbr.rel (0) target = $region41
    $region40: #{tpu_custom_call.1} parent=1 // pred_region
      _
    $region41: #{tpu_custom_call.1} parent=1 // pred_fallthru
      _
    // Predicated region
    $region42: #{tpu_custom_call.1} parent=1 // pred_check
      _
    $region43: #{tpu_custom_call.1} parent=1 // pred_check_branch
      %50 = sbr.rel (0) target = $region45
    $region44: #{tpu_custom_call.1} parent=1 // pred_region
      %51 = dma.done [#allocation3], 16
    $region45: #{tpu_custom_call.1} parent=1 // pred_fallthru
      _
    %v53 = vld [vmem:[%s0] sm:$0xf]
    %v54 = vld [vmem:[%s0 + $0x4] sm:$0xf]
    %v55 = vld [vmem:[%s0 + $0x8] sm:$0xf]
    %v56 = vld [vmem:[%s0 + $0xc] sm:$0xf]
    %v57 = vld [vmem:[%s0 + $0x10] sm:$0xf]
    %v58 = vld [vmem:[%s0 + $0x14] sm:$0xf]
    %v59 = vld [vmem:[%s0 + $0x18] sm:$0xf]
    %v60 = vld [vmem:[%s0 + $0x1c] sm:$0xf]
    %v61 = vunpack.c.l.bf16 %v53
    %v62 = vunpack.c.l.bf16 %v54
    %v63 = vunpack.c.l.bf16 %v55
    %v64 = vunpack.c.l.bf16 %v56
    %v65 = vunpack.c.l.bf16 %v57
    %v66 = vunpack.c.l.bf16 %v58
    %v67 = vunpack.c.l.bf16 %v59
    %v68 = vunpack.c.l.bf16 %v60
    %v69 = vld [vmem:[%s1] sm:$0xff]
    %v70 = vld [vmem:[%s1 + $0x8] sm:$0xff]
    %v71 = vld [vmem:[%s1 + $0x10] sm:$0xff]
    %v72 = vld [vmem:[%s1 + $0x18] sm:$0xff]
    %v73 = vld [vmem:[%s1 + $0x20] sm:$0xff]
    %v74 = vld [vmem:[%s1 + $0x28] sm:$0xff]
    %v75 = vld [vmem:[%s1 + $0x30] sm:$0xff]
    %v76 = vld [vmem:[%s1 + $0x38] sm:$0xff]
    %78 = vset.pattern.permute.xlu0 0
    %79 = vperm.xlu0 %78, %v69
    %v80 = vpop.permute.xlu0 %79
    %83 = vset.pattern.permute.xlu0 0
    %84 = vperm.xlu0 %83, %v70
    %v85 = vpop.permute.xlu0 %84
    %88 = vset.pattern.permute.xlu0 0
    %89 = vperm.xlu0 %88, %v71
    %v90 = vpop.permute.xlu0 %89
    %93 = vset.pattern.permute.xlu0 0
    %94 = vperm.xlu0 %93, %v72
    %v95 = vpop.permute.xlu0 %94
    %98 = vset.pattern.permute.xlu0 0
    %99 = vperm.xlu0 %98, %v73
    %v100 = vpop.permute.xlu0 %99
    %103 = vset.pattern.permute.xlu0 0
    %104 = vperm.xlu0 %103, %v74
    %v105 = vpop.permute.xlu0 %104
    %108 = vset.pattern.permute.xlu0 0
    %109 = vperm.xlu0 %108, %v75
    %v110 = vpop.permute.xlu0 %109
    %113 = vset.pattern.permute.xlu0 0
    %114 = vperm.xlu0 %113, %v76
    %v115 = vpop.permute.xlu0 %114
    %v117 = vmul.f32 %v61, %v80
    %v118 = vmul.f32 %v62, %v85
    %v119 = vmul.f32 %v63, %v90
    %v120 = vmul.f32 %v64, %v95
    %v121 = vmul.f32 %v65, %v100
    %v122 = vmul.f32 %v66, %v105
    %v123 = vmul.f32 %v67, %v110
    %v124 = vmul.f32 %v68, %v115
    %vm125 = vcmask 261120
    %v126 = vsel %vm125, %v117, 0.0
    %v127 = vrot.slane %v126, 4
    %v128 = vadd.f32 %v126, %v127
    %v129 = vrot.slane %v128, 2
    %v130 = vadd.f32 %v128, %v129
    %v131 = vrot.slane %v130, 1
    %v132 = vadd.f32 %v130, %v131
    %v133 = vsel %vm125, %v118, 0.0
    %v134 = vrot.slane %v133, 4
    %v135 = vadd.f32 %v133, %v134
    %v136 = vrot.slane %v135, 2
    %v137 = vadd.f32 %v135, %v136
    %v138 = vrot.slane %v137, 1
    %v139 = vadd.f32 %v137, %v138
    %v140 = vsel %vm125, %v119, 0.0
    %v141 = vrot.slane %v140, 4
    %v142 = vadd.f32 %v140, %v141
    %v143 = vrot.slane %v142, 2
    %v144 = vadd.f32 %v142, %v143
    %v145 = vrot.slane %v144, 1
    %v146 = vadd.f32 %v144, %v145
    %v147 = vsel %vm125, %v120, 0.0
    %v148 = vrot.slane %v147, 4
    %v149 = vadd.f32 %v147, %v148
    %v150 = vrot.slane %v149, 2
    %v151 = vadd.f32 %v149, %v150
    %v152 = vrot.slane %v151, 1
    %v153 = vadd.f32 %v151, %v152
    %v154 = vsel %vm125, %v121, 0.0
    %v155 = vrot.slane %v154, 4
    %v156 = vadd.f32 %v154, %v155
    %v157 = vrot.slane %v156, 2
    %v158 = vadd.f32 %v156, %v157
    %v159 = vrot.slane %v158, 1
    %v160 = vadd.f32 %v158, %v159
    %v161 = vsel %vm125, %v122, 0.0
    %v162 = vrot.slane %v161, 4
    %v163 = vadd.f32 %v161, %v162
    %v164 = vrot.slane %v163, 2
    %v165 = vadd.f32 %v163, %v164
    %v166 = vrot.slane %v165, 1
    %v167 = vadd.f32 %v165, %v166
    %v168 = vsel %vm125, %v123, 0.0
    %v169 = vrot.slane %v168, 4
    %v170 = vadd.f32 %v168, %v169
    %v171 = vrot.slane %v170, 2
    %v172 = vadd.f32 %v170, %v171
    %v173 = vrot.slane %v172, 1
    %v174 = vadd.f32 %v172, %v173
    %v175 = vsel %vm125, %v124, 0.0
    %v176 = vrot.slane %v175, 4
    %v177 = vadd.f32 %v175, %v176
    %v178 = vrot.slane %v177, 2
    %v179 = vadd.f32 %v177, %v178
    %v180 = vrot.slane %v179, 1
    %v181 = vadd.f32 %v179, %v180
    %vm182 = vcmask 7168
    %v183 = vsel %vm182, %v69, 0.0
    %v184 = vrot.slane %v183, 4
    %v185 = vadd.f32 %v183, %v184
    %v186 = vrot.slane %v185, 2
    %v187 = vadd.f32 %v185, %v186
    %v188 = vrot.slane %v187, 1
    %v189 = vadd.f32 %v187, %v188
    %v190 = vsel %vm182, %v70, 0.0
    %v191 = vrot.slane %v190, 4
    %v192 = vadd.f32 %v190, %v191
    %v193 = vrot.slane %v192, 2
    %v194 = vadd.f32 %v192, %v193
    %v195 = vrot.slane %v194, 1
    %v196 = vadd.f32 %v194, %v195
    %v197 = vsel %vm182, %v71, 0.0
    %v198 = vrot.slane %v197, 4
    %v199 = vadd.f32 %v197, %v198
    %v200 = vrot.slane %v199, 2
    %v201 = vadd.f32 %v199, %v200
    %v202 = vrot.slane %v201, 1
    %v203 = vadd.f32 %v201, %v202
    %v204 = vsel %vm182, %v72, 0.0
    %v205 = vrot.slane %v204, 4
    %v206 = vadd.f32 %v204, %v205
    %v207 = vrot.slane %v206, 2
    %v208 = vadd.f32 %v206, %v207
    %v209 = vrot.slane %v208, 1
    %v210 = vadd.f32 %v208, %v209
    %v211 = vsel %vm182, %v73, 0.0
    %v212 = vrot.slane %v211, 4
    %v213 = vadd.f32 %v211, %v212
    %v214 = vrot.slane %v213, 2
    %v215 = vadd.f32 %v213, %v214
    %v216 = vrot.slane %v215, 1
    %v217 = vadd.f32 %v215, %v216
    %v218 = vsel %vm182, %v74, 0.0
    %v219 = vrot.slane %v218, 4
    %v220 = vadd.f32 %v218, %v219
    %v221 = vrot.slane %v220, 2
    %v222 = vadd.f32 %v220, %v221
    %v223 = vrot.slane %v222, 1
    %v224 = vadd.f32 %v222, %v223
    %v225 = vsel %vm182, %v75, 0.0
    %v226 = vrot.slane %v225, 4
    %v227 = vadd.f32 %v225, %v226
    %v228 = vrot.slane %v227, 2
    %v229 = vadd.f32 %v227, %v228
    %v230 = vrot.slane %v229, 1
    %v231 = vadd.f32 %v229, %v230
    %v232 = vsel %vm182, %v76, 0.0
    %v233 = vrot.slane %v232, 4
    %v234 = vadd.f32 %v232, %v233
    %v235 = vrot.slane %v234, 2
    %v236 = vadd.f32 %v234, %v235
    %v237 = vrot.slane %v236, 1
    %v238 = vadd.f32 %v236, %v237
    %240 = vset.pattern.permute.xlu0 0
    %241 = vperm.xlu0 %240, %v189
    %v242 = vpop.permute.xlu0 %241
    %245 = vset.pattern.permute.xlu0 0
    %246 = vperm.xlu0 %245, %v196
    %v247 = vpop.permute.xlu0 %246
    %250 = vset.pattern.permute.xlu0 0
    %251 = vperm.xlu0 %250, %v203
    %v252 = vpop.permute.xlu0 %251
    %255 = vset.pattern.permute.xlu0 0
    %256 = vperm.xlu0 %255, %v210
    %v257 = vpop.permute.xlu0 %256
    %260 = vset.pattern.permute.xlu0 0
    %261 = vperm.xlu0 %260, %v217
    %v262 = vpop.permute.xlu0 %261
    %265 = vset.pattern.permute.xlu0 0
    %266 = vperm.xlu0 %265, %v224
    %v267 = vpop.permute.xlu0 %266
    %270 = vset.pattern.permute.xlu0 0
    %271 = vperm.xlu0 %270, %v231
    %v272 = vpop.permute.xlu0 %271
    %275 = vset.pattern.permute.xlu0 0
    %276 = vperm.xlu0 %275, %v238
    %v277 = vpop.permute.xlu0 %276
    %v279 = vrcp.pop %v242
    %v280 = vmul.f32 %v132, %v279
    %v281 = vrcp.pop %v247
    %v282 = vmul.f32 %v139, %v281
    %v283 = vrcp.pop %v252
    %v284 = vmul.f32 %v146, %v283
    %v285 = vrcp.pop %v257
    %v286 = vmul.f32 %v153, %v285
    %v287 = vrcp.pop %v262
    %v288 = vmul.f32 %v160, %v287
    %v289 = vrcp.pop %v267
    %v290 = vmul.f32 %v167, %v289
    %v291 = vrcp.pop %v272
    %v292 = vmul.f32 %v174, %v291
    %v293 = vrcp.pop %v277
    %v294 = vmul.f32 %v181, %v293
    %vm303 = vcmask 1041409
    %v304 = vsel %vm303, %v282, %v280
    %vm305 = vcmask 1042434
    %v306 = vsel %vm305, %v284, %v304
    %vm307 = vcmask 1043459
    %v308 = vsel %vm307, %v286, %v306
    %vm309 = vcmask 1044484
    %v310 = vsel %vm309, %v288, %v308
    %vm311 = vcmask 1045509
    %v312 = vsel %vm311, %v290, %v310
    %vm313 = vcmask 1046534
    %v314 = vsel %vm313, %v292, %v312
    %vm315 = vcmask 1047559
    %v316 = vsel %vm315, %v294, %v314
    %318 = vst.msk [vmem:[#allocation5] sm:$0xff] %vm125, %v316
    %v319 = vpack.c.bf16 %v280, %v280
    %v320 = vpack.c.bf16 %v282, %v282
    %v321 = vpack.c.bf16 %v284, %v284
    %v322 = vpack.c.bf16 %v286, %v286
    %v323 = vpack.c.bf16 %v288, %v288
    %v324 = vpack.c.bf16 %v290, %v290
    %v325 = vpack.c.bf16 %v292, %v292
    %v326 = vpack.c.bf16 %v294, %v294
    %v327 = vld [vmem:[%s2] sm:$0xf]
    %v328 = vld [vmem:[%s2 + $0x4] sm:$0xf]
    %v329 = vld [vmem:[%s2 + $0x8] sm:$0xf]
    %v330 = vld [vmem:[%s2 + $0xc] sm:$0xf]
    %v331 = vld [vmem:[%s3] sm:$0x1]
    %v333 = vlaneseq
    %v334 = vshrl.u32 %v333, 7
    %v335 = vsub.s32 0, %v334
    %v336 = vrot.slane %v331, %v335
    %v346 = vunpack.c.l.b16 %v319
    %v347 = vunpack.c.l.b16 %v320
    %v348 = vunpack.c.l.b16 %v321
    %v349 = vunpack.c.l.b16 %v322
    %v350 = vunpack.c.l.b16 %v323
    %v351 = vunpack.c.l.b16 %v324
    %v352 = vunpack.c.l.b16 %v325
    %v353 = vunpack.c.l.b16 %v326
    %v354 = vsel %vm303, %v347, %v346
    %v355 = vsel %vm305, %v348, %v354
    %v356 = vsel %vm307, %v349, %v355
    %v357 = vsel %vm309, %v350, %v356
    %v358 = vsel %vm311, %v351, %v357
    %v359 = vsel %vm313, %v352, %v358
    %v360 = vsel %vm315, %v353, %v359
    %v361 = vpack.c.b16 %v360, %v360
    %v366 = vunpack.c.l.b16 %v327
    %v367 = vunpack.c.l.b16 %v328
    %v368 = vunpack.c.l.b16 %v329
    %v369 = vunpack.c.l.b16 %v330
    %v370 = vpack.c.b16 %v367, %v366
    %v371 = vpack.c.b16 %v369, %v368
    %v375 = vsel %vm125, %v361, 0
    %377 = vmatprep.subr.bf16.mxu0 0
    %378 = vmatpush1.bf16.msra.mxu0 %v370
    %379 = vmatprep.subr.bf16.mxu0 0
    %380 = vmatpush1.bf16.msra.mxu0 %v371
    %381 = vmatprep.subr.bf16.mxu0 0
    %382 = vmatpush1.bf16.msra.mxu0 0
    %383 = vmatprep.subr.bf16.mxu0 0
    %384 = vmatpush1.bf16.msra.mxu0 0
    %385 = vmatprep.subr.bf16.mxu0 0
    %386 = vmatpush1.bf16.msra.mxu0 0
    %387 = vmatprep.subr.bf16.mxu0 0
    %388 = vmatpush1.bf16.msra.mxu0 0
    %389 = vmatprep.subr.bf16.mxu0 0
    %390 = vmatpush1.bf16.msra.mxu0 0
    %391 = vmatprep.subr.bf16.mxu0 0
    %392 = vmatpush1.bf16.msra.mxu0 0
    %393 = vmatprep.subr.bf16.mxu0 0
    %394 = vmatpush1.bf16.msra.mxu0 0
    %395 = vmatprep.subr.bf16.mxu0 0
    %396 = vmatpush1.bf16.msra.mxu0 0
    %397 = vmatprep.subr.bf16.mxu0 0
    %398 = vmatpush1.bf16.msra.mxu0 0
    %399 = vmatprep.subr.bf16.mxu0 0
    %400 = vmatpush1.bf16.msra.mxu0 0
    %401 = vmatprep.subr.bf16.mxu0 0
    %402 = vmatpush1.bf16.msra.mxu0 0
    %403 = vmatprep.subr.bf16.mxu0 0
    %404 = vmatpush1.bf16.msra.mxu0 0
    %405 = vmatprep.subr.bf16.mxu0 0
    %406 = vmatpush1.bf16.msra.mxu0 0
    %407 = vmatprep.subr.bf16.mxu0 0
    %408 = vmatpush1.bf16.msra.mxu0 0
    %409 = vmatprep.mubr.bf16.mxu0 0
    %410 = vmatmul.mubr.bf16.gmra.mrb[0].mxu0 %v375
    %v411 = vpop.f32.mrb[0].mxu0
    %v412 = vadd.f32 %v336, %v411
    %v413 = vpop.f32.mrb[0].mxu0
    %v414 = vpop.f32.mrb[0].mxu0
    %v415 = vpop.f32.mrb[0].mxu0
    %416 = vdwg.mxu0
    %v417 = vmax.f32 %v412, 0.0
    %v418 = vpack.c.bf16 %v417, %v417
    %v419 = vld [vmem:[%s6] sm:$0xf]
    %v420 = vld [vmem:[%s6 + $0x4] sm:$0xf]
    %v421 = vld [vmem:[%s6 + $0x8] sm:$0xf]
    %v422 = vld [vmem:[%s6 + $0xc] sm:$0xf]
    %v423 = vld [vmem:[#allocation2] sm:$0x1]
    %v425 = vlaneseq
    %v426 = vshrl.u32 %v425, 7
    %v427 = vsub.s32 0, %v426
    %v428 = vrot.slane %v423, %v427
    %v434 = vunpack.c.l.b16 %v419
    %v435 = vunpack.c.l.b16 %v420
    %v436 = vunpack.c.l.b16 %v421
    %v437 = vunpack.c.l.b16 %v422
    %v438 = vpack.c.b16 %v435, %v434
    %v439 = vpack.c.b16 %v437, %v436
    %v443 = vsel %vm125, %v418, 0
    %445 = vmatprep.subr.bf16.mxu0 0
    %446 = vmatpush1.bf16.msra.mxu0 %v438
    %447 = vmatprep.subr.bf16.mxu0 0
    %448 = vmatpush1.bf16.msra.mxu0 %v439
    %449 = vmatprep.subr.bf16.mxu0 0
    %450 = vmatpush1.bf16.msra.mxu0 0
    %451 = vmatprep.subr.bf16.mxu0 0
    %452 = vmatpush1.bf16.msra.mxu0 0
    %453 = vmatprep.subr.bf16.mxu0 0
    %454 = vmatpush1.bf16.msra.mxu0 0
    %455 = vmatprep.subr.bf16.mxu0 0
    %456 = vmatpush1.bf16.msra.mxu0 0
    %457 = vmatprep.subr.bf16.mxu0 0
    %458 = vmatpush1.bf16.msra.mxu0 0
    %459 = vmatprep.subr.bf16.mxu0 0
    %460 = vmatpush1.bf16.msra.mxu0 0
    %461 = vmatprep.subr.bf16.mxu0 0
    %462 = vmatpush1.bf16.msra.mxu0 0
    %463 = vmatprep.subr.bf16.mxu0 0
    %464 = vmatpush1.bf16.msra.mxu0 0
    %465 = vmatprep.subr.bf16.mxu0 0
    %466 = vmatpush1.bf16.msra.mxu0 0
    %467 = vmatprep.subr.bf16.mxu0 0
    %468 = vmatpush1.bf16.msra.mxu0 0
    %469 = vmatprep.subr.bf16.mxu0 0
    %470 = vmatpush1.bf16.msra.mxu0 0
    %471 = vmatprep.subr.bf16.mxu0 0
    %472 = vmatpush1.bf16.msra.mxu0 0
    %473 = vmatprep.subr.bf16.mxu0 0
    %474 = vmatpush1.bf16.msra.mxu0 0
    %475 = vmatprep.subr.bf16.mxu0 0
    %476 = vmatpush1.bf16.msra.mxu0 0
    %477 = vmatprep.mubr.bf16.mxu0 0
    %478 = vmatmul.mubr.bf16.gmra.mrb[0].mxu0 %v443
    %v479 = vpop.f32.mrb[0].mxu0
    %v480 = vadd.f32 %v428, %v479
    %v481 = vpop.f32.mrb[0].mxu0
    %v482 = vpop.f32.mrb[0].mxu0
    %v483 = vpop.f32.mrb[0].mxu0
    %484 = vdwg.mxu0
    %v485 = vmul.f32 %v480, %v480
    %486 = vadd.xlane.f32.xlu0 %v485
    %v487 = vpop.xlane.xlu0 %486
    %v488 = vmax.f32 %v487, 1e-24
    %v489 = vrsqrt.pop %v488
    %v490 = vmul.f32 %v480, %v489
    %491 = vst [vmem:[#allocation6] sm:$0xff] %v490
    %v492 = vld [vmem:[%s4] sm:$0xf]
    %v493 = vld [vmem:[%s4 + $0x4] sm:$0xf]
    %v494 = vld [vmem:[%s4 + $0x8] sm:$0xf]
    %v495 = vld [vmem:[%s4 + $0xc] sm:$0xf]
    %v496 = vld [vmem:[%s5] sm:$0x1]
    %v498 = vlaneseq
    %v499 = vshrl.u32 %v498, 7
    %v500 = vsub.s32 0, %v499
    %v501 = vrot.slane %v496, %v500
    %v507 = vunpack.c.l.b16 %v492
    %v508 = vunpack.c.l.b16 %v493
    %v509 = vunpack.c.l.b16 %v494
    %v510 = vunpack.c.l.b16 %v495
    %v511 = vpack.c.b16 %v508, %v507
    %v512 = vpack.c.b16 %v510, %v509
    %515 = vmatprep.subr.bf16.mxu0 0
    %516 = vmatpush1.bf16.msra.mxu0 %v511
    %517 = vmatprep.subr.bf16.mxu0 0
    %518 = vmatpush1.bf16.msra.mxu0 %v512
    %519 = vmatprep.subr.bf16.mxu0 0
    %520 = vmatpush1.bf16.msra.mxu0 0
    %521 = vmatprep.subr.bf16.mxu0 0
    %522 = vmatpush1.bf16.msra.mxu0 0
    %523 = vmatprep.subr.bf16.mxu0 0
    %524 = vmatpush1.bf16.msra.mxu0 0
    %525 = vmatprep.subr.bf16.mxu0 0
    %526 = vmatpush1.bf16.msra.mxu0 0
    %527 = vmatprep.subr.bf16.mxu0 0
    %528 = vmatpush1.bf16.msra.mxu0 0
    %529 = vmatprep.subr.bf16.mxu0 0
    %530 = vmatpush1.bf16.msra.mxu0 0
    %531 = vmatprep.subr.bf16.mxu0 0
    %532 = vmatpush1.bf16.msra.mxu0 0
    %533 = vmatprep.subr.bf16.mxu0 0
    %534 = vmatpush1.bf16.msra.mxu0 0
    %535 = vmatprep.subr.bf16.mxu0 0
    %536 = vmatpush1.bf16.msra.mxu0 0
    %537 = vmatprep.subr.bf16.mxu0 0
    %538 = vmatpush1.bf16.msra.mxu0 0
    %539 = vmatprep.subr.bf16.mxu0 0
    %540 = vmatpush1.bf16.msra.mxu0 0
    %541 = vmatprep.subr.bf16.mxu0 0
    %542 = vmatpush1.bf16.msra.mxu0 0
    %543 = vmatprep.subr.bf16.mxu0 0
    %544 = vmatpush1.bf16.msra.mxu0 0
    %545 = vmatprep.subr.bf16.mxu0 0
    %546 = vmatpush1.bf16.msra.mxu0 0
    %547 = vmatprep.mubr.bf16.mxu0 0
    %548 = vmatmul.mubr.bf16.gmra.mrb[0].mxu0 %v375
    %v549 = vpop.f32.mrb[0].mxu0
    %v550 = vadd.f32 %v501, %v549
    %v551 = vpop.f32.mrb[0].mxu0
    %v552 = vpop.f32.mrb[0].mxu0
    %v553 = vpop.f32.mrb[0].mxu0
    %554 = vdwg.mxu0
    %v555 = vmax.f32 %v550, 0.0
    %v556 = vpack.c.bf16 %v555, %v555
    %v557 = vld [vmem:[%s8] sm:$0xf]
    %v558 = vld [vmem:[%s8 + $0x4] sm:$0xf]
    %v559 = vld [vmem:[%s8 + $0x8] sm:$0xf]
    %v560 = vld [vmem:[%s8 + $0xc] sm:$0xf]
    %v561 = vld [vmem:[%s9] sm:$0x1]
    %v563 = vlaneseq
    %v564 = vshrl.u32 %v563, 7
    %v565 = vsub.s32 0, %v564
    %v566 = vrot.slane %v561, %v565
    %v572 = vunpack.c.l.b16 %v557
    %v573 = vunpack.c.l.b16 %v558
    %v574 = vunpack.c.l.b16 %v559
    %v575 = vunpack.c.l.b16 %v560
    %v576 = vpack.c.b16 %v573, %v572
    %v577 = vpack.c.b16 %v575, %v574
    %v581 = vsel %vm125, %v556, 0
    %583 = vmatprep.subr.bf16.mxu0 0
    %584 = vmatpush1.bf16.msra.mxu0 %v576
    %585 = vmatprep.subr.bf16.mxu0 0
    %586 = vmatpush1.bf16.msra.mxu0 %v577
    %587 = vmatprep.subr.bf16.mxu0 0
    %588 = vmatpush1.bf16.msra.mxu0 0
    %589 = vmatprep.subr.bf16.mxu0 0
    %590 = vmatpush1.bf16.msra.mxu0 0
    %591 = vmatprep.subr.bf16.mxu0 0
    %592 = vmatpush1.bf16.msra.mxu0 0
    %593 = vmatprep.subr.bf16.mxu0 0
    %594 = vmatpush1.bf16.msra.mxu0 0
    %595 = vmatprep.subr.bf16.mxu0 0
    %596 = vmatpush1.bf16.msra.mxu0 0
    %597 = vmatprep.subr.bf16.mxu0 0
    %598 = vmatpush1.bf16.msra.mxu0 0
    %599 = vmatprep.subr.bf16.mxu0 0
    %600 = vmatpush1.bf16.msra.mxu0 0
    %601 = vmatprep.subr.bf16.mxu0 0
    %602 = vmatpush1.bf16.msra.mxu0 0
    %603 = vmatprep.subr.bf16.mxu0 0
    %604 = vmatpush1.bf16.msra.mxu0 0
    %605 = vmatprep.subr.bf16.mxu0 0
    %606 = vmatpush1.bf16.msra.mxu0 0
    %607 = vmatprep.subr.bf16.mxu0 0
    %608 = vmatpush1.bf16.msra.mxu0 0
    %609 = vmatprep.subr.bf16.mxu0 0
    %610 = vmatpush1.bf16.msra.mxu0 0
    %611 = vmatprep.subr.bf16.mxu0 0
    %612 = vmatpush1.bf16.msra.mxu0 0
    %613 = vmatprep.subr.bf16.mxu0 0
    %614 = vmatpush1.bf16.msra.mxu0 0
    %615 = vmatprep.mubr.bf16.mxu0 0
    %616 = vmatmul.mubr.bf16.gmra.mrb[0].mxu0 %v581
    %v617 = vpop.f32.mrb[0].mxu0
    %v618 = vadd.f32 %v566, %v617
    %v619 = vpop.f32.mrb[0].mxu0
    %v620 = vpop.f32.mrb[0].mxu0
    %v621 = vpop.f32.mrb[0].mxu0
    %622 = vdwg.mxu0
    %623 = vmax.xlane.f32.xlu0 %v618
    %v624 = vpop.xlane.xlu0 %623
    %v625 = vsub.f32 %v618, %v624
    %v626 = vmul.f32 %v625, 1.442695
    %v627 = vpow.pop %v626
    %628 = vadd.xlane.f32.xlu0 %v627
    %v629 = vpop.xlane.xlu0 %628
    %v630 = vrcp.pop %v629
    %v631 = vmul.f32 %v627, %v630
    %632 = vst [vmem:[#allocation8] sm:$0xff] %v631
    // Predicated region
    $region46: #{tpu_custom_call.1} parent=1 // pred_check
      _
    $region47: #{tpu_custom_call.1} parent=1 // pred_check_branch
      %634 = sbr.rel (0) target = $region49
    $region48: #{tpu_custom_call.1} parent=1 // pred_region
      %s636 = ssub.s32 128, 128
      %637 = vsyncadd [#allocation4], %s636
      %s639 = sshll.u32 [#allocation5], 4
      %s640 = int_to_ptr.vmem [resolvable:$true] %s639
      %642 = dma.vmem_to_hbm [thread:$0]  %s640, 128, %s10, [#allocation4]
    $region49: #{tpu_custom_call.1} parent=1 // pred_fallthru
      _
    // Predicated region
    $region50: #{tpu_custom_call.1} parent=1 // pred_check
      _
    $region51: #{tpu_custom_call.1} parent=1 // pred_check_branch
      %644 = sbr.rel (0) target = $region53
    $region52: #{tpu_custom_call.1} parent=1 // pred_region
      %s646 = ssub.s32 128, 128
      %647 = vsyncadd [#allocation7], %s646
      %s649 = sshll.u32 [#allocation6], 4
      %s650 = int_to_ptr.vmem [resolvable:$true] %s649
      %652 = dma.vmem_to_hbm [thread:$0]  %s650, 128, %s11, [#allocation7]
    $region53: #{tpu_custom_call.1} parent=1 // pred_fallthru
      _
    // Predicated region
    $region54: #{tpu_custom_call.1} parent=1 // pred_check
      _
    $region55: #{tpu_custom_call.1} parent=1 // pred_check_branch
      %654 = sbr.rel (0) target = $region57
    $region56: #{tpu_custom_call.1} parent=1 // pred_region
      %s656 = ssub.s32 128, 128
      %657 = vsyncadd [#allocation7], %s656
      %s659 = sshll.u32 [#allocation8], 4
      %s660 = int_to_ptr.vmem [resolvable:$true] %s659
      %662 = dma.vmem_to_hbm [thread:$0]  %s660, 128, %s12, [#allocation7]
    $region57: #{tpu_custom_call.1} parent=1 // pred_fallthru
      _
    // Predicated region
    $region58: #{tpu_custom_call.1} parent=1 // pred_check
      _
    $region59: #{tpu_custom_call.1} parent=1 // pred_check_branch
      %664 = sbr.rel (0) target = $region61
    $region60: #{tpu_custom_call.1} parent=1 // pred_region
      %665 = dma.done [#allocation4], 128
    $region61: #{tpu_custom_call.1} parent=1 // pred_fallthru
      _
    // Predicated region
    $region62: #{tpu_custom_call.1} parent=1 // pred_check
      _
    $region63: #{tpu_custom_call.1} parent=1 // pred_check_branch
      %667 = sbr.rel (0) target = $region65
    $region64: #{tpu_custom_call.1} parent=1 // pred_region
      %668 = dma.done [#allocation7], 128
    $region65: #{tpu_custom_call.1} parent=1 // pred_fallthru
      _
    // Predicated region
    $region66: #{tpu_custom_call.1} parent=1 // pred_check
      _
    $region67: #{tpu_custom_call.1} parent=1 // pred_check_branch
      %670 = sbr.rel (0) target = $region69
    $region68: #{tpu_custom_call.1} parent=1 // pred_region
      %671 = dma.done [#allocation7], 128
    $region69: #{tpu_custom_call.1} parent=1 // pred_fallthru
      _
    %672 = vsyncpa [#allocation3], 1
    %673 = vsyncpa [#allocation4], 1
    %674 = vsyncpa [#allocation7], 1

</llo_original>
